<compile_context>
chip_gen: v7x
topology: tpu7x:2x2x1
jax: 0.10.0
libtpu: 0.0.40
codegen_flags: <defaults>
</compile_context>

<pallas_src>
import functools

import jax
import jax.numpy as jnp
import numpy as np
from jax.experimental import pallas as pl
from jax.experimental.pallas import tpu as pltpu

_MiB = 1024 * 1024


# ---------------------------------------------------------------------------
# Kernel 1: fused q/k/v projection + rotary (runs ONCE per (batch, token tile)).
# ---------------------------------------------------------------------------
def _proj_rot_kernel(x_ref, wq_ref, wk_ref, wv_ref, cos_ref, sin_ref,
                     q_out, k_out, v_out, *, nheads, hd_pad):
    f32 = jnp.float32
    bf16 = jnp.bfloat16
    half = hd_pad // 2

    x = x_ref[...]                                                  # (Tt, dim) bf16
    # bf16 MXU dots, f32 accumulation.  Heads packed at 128-aligned lane offsets;
    # the head_dim**-0.5 scale is already folded into wq.
    q_all = jnp.dot(x, wq_ref[...], preferred_element_type=f32)    # (Tt, hp)
    k_all = jnp.dot(x, wk_ref[...], preferred_element_type=f32)
    v_all = jnp.dot(x, wv_ref[...], preferred_element_type=f32)

    cos = cos_ref[...]                                              # (Tt, half) f32
    sin = sin_ref[...]

    def rotate(u):                                                  # (Tt, hd_pad)
        ue, uo = u[:, :half], u[:, half:]
        return jnp.concatenate([ue * cos - uo * sin, uo * cos + ue * sin], axis=1)

    for h in range(nheads):                                         # small static unroll
        lo = h * hd_pad
        hi = lo + hd_pad
        q_out[:, lo:hi] = rotate(q_all[:, lo:hi]).astype(bf16)
        k_out[:, lo:hi] = rotate(k_all[:, lo:hi]).astype(bf16)
    v_out[...] = v_all.astype(bf16)


# ---------------------------------------------------------------------------
# Kernel 2: causal attention + fused output projection over query tiles.
# ---------------------------------------------------------------------------
def _attn_kernel(q_ref, k_ref, v_ref, wout_ref, y_ref, attn_ref, o_scratch,
                 *, nheads, hd_pad):
    f32 = jnp.float32
    bf16 = jnp.bfloat16
    Tq = q_ref.shape[0]
    T = k_ref.shape[0]

    q_start = pl.program_id(1) * Tq                                  # global row offset
    row = q_start + jax.lax.broadcasted_iota(jnp.int32, (Tq, T), 0)
    col = jax.lax.broadcasted_iota(jnp.int32, (Tq, T), 1)
    causal = col <= row

    # TODO(synk): restrict the kv extent to (qi+1)*Tq columns (chunked QK/PV,
    # zero-filling the skipped attn blocks) for ~2x fewer attention flops at large T.
    for h in range(nheads):                                          # aligned lane slices
        lo = h * hd_pad
        hi = lo + hd_pad
        qh = q_ref[:, lo:hi]                                         # (Tq, hd) bf16
        kh = k_ref[:, lo:hi]                                         # (T,  hd) bf16
        vh = v_ref[:, lo:hi]

        # (Tq, hd) x (T, hd) contracted on the last dims -> (Tq, T), no transpose op.
        logits = jax.lax.dot_general(qh, kh, (((1,), (1,)), ((), ())),
                                     preferred_element_type=f32)
        logits = jnp.where(causal, logits, -1e30)

        m = jnp.max(logits, axis=-1, keepdims=True)
        p = jnp.exp(logits - m)
        inv = 1.0 / jnp.sum(p, axis=-1, keepdims=True)               # exact, (Tq, 1)
        attn = p * inv
        attn_ref[h, :, :] = attn.astype(attn_ref.dtype)

        oh = jnp.dot(attn.astype(bf16), vh, preferred_element_type=f32)
        o_scratch[:, lo:hi] = oh.astype(o_scratch.dtype)

    # Single fused output projection over all heads (padded rows of wout are zero).
    y_ref[...] = jnp.dot(o_scratch[...], wout_ref[...],
                         preferred_element_type=f32).astype(y_ref.dtype)


# ---------------------------------------------------------------------------
# Per-generation VMEM sizing helpers.
# ---------------------------------------------------------------------------
def _vmem_capacity_bytes():
    try:
        info = pltpu.get_tpu_info()
        cap = getattr(info, "vmem_capacity_bytes", None)
        if cap:
            return int(cap)
    except Exception:
        pass
    return 128 * _MiB  # v5e/v6e default; v7x reports 64 MiB via get_tpu_info


def _attn_vmem_bytes(q_tile, T, dim, hp, nheads, attn_bytes):
    q_blk = 2 * q_tile * hp * 2                    # q tile, bf16, double buffered
    kv_blk = 2 * (2 * T * hp * 2)                  # full-T K and V, bf16, x2 buf
    wout_blk = 2 * hp * dim * 2
    y_blk = 2 * q_tile * dim * 4
    attn_blk = 2 * nheads * q_tile * T * attn_bytes
    scratch = q_tile * hp * 2
    temps = q_tile * T * 12                        # logits f32 + p f32 + attn bf16 + slack
    return q_blk + kv_blk + wout_blk + y_blk + attn_blk + scratch + temps


def _pick_q_tile(T, dim, hp, nheads, attn_bytes, vmem_cap):
    budget = int(vmem_cap * 0.7)
    candidates = [c for c in (512, 256, 128, 64, 32, 16) if T % c == 0]
    if not candidates:
        candidates = [T]
    for qt in candidates:
        if _attn_vmem_bytes(qt, T, dim, hp, nheads, attn_bytes) <= budget:
            return qt
    return candidates[-1]


def _clamp_vmem_limit(estimate, cap):
    return int(max(32 * _MiB, min(int(cap * 0.9), estimate + 16 * _MiB)))


# ---------------------------------------------------------------------------
# Wrapper.
# ---------------------------------------------------------------------------
def slow_mha_pallas(x, qkv_proj, out_w, nheads, head_dim, theta=10000.0,
                    q_tile=None, attn_dtype=jnp.bfloat16):
    """x: (B, T, dim) f32; qkv_proj: (3, nheads*head_dim, dim); out_w: (dim, nheads*head_dim)."""
    B, T, dim = x.shape
    assert dim == head_dim, "reference Rotary broadcast requires dim == head_dim"
    assert head_dim % 2 == 0

    hd_pad = 128 * ((head_dim + 127) // 128)       # per-head lane-aligned width
    hp = nheads * hd_pad
    half_t = head_dim // 2
    half_p = hd_pad // 2
    attn_bytes = np.dtype(attn_dtype).itemsize

    vmem_cap = _vmem_capacity_bytes()
    if q_tile is None:
        q_tile = _pick_q_tile(T, dim, hp, nheads, attn_bytes, vmem_cap)
    assert T % q_tile == 0
    n_q_tiles = T // q_tile
    t_tile = q_tile

    # --- rotary tables (built exactly like Rotary.__init__, with `dim`) ---
    speed = theta ** (-(jnp.arange(0, dim, 2)[: dim // 2].astype(jnp.float32) / dim))
    freqs = jnp.outer(jnp.arange(T, dtype=jnp.float32), speed)       # (T, half_t)
    cos, sin = jnp.cos(freqs), jnp.sin(freqs)
    zc = jnp.zeros((T, half_p - half_t), jnp.float32)
    cos_p = jnp.concatenate([cos, zc], axis=-1)                      # (T, half_p)
    sin_p = jnp.concatenate([sin, zc], axis=-1)

    # --- host-side weight packing: per head [evens | pad | odds | pad] rows ---
    w = qkv_proj.reshape(3, nheads, head_dim, dim)

    def pack_qk(wh, scale):
        even = wh[:, 0::2, :] * scale                                # (nheads, half_t, dim)
        odd = wh[:, 1::2, :] * scale
        zp = jnp.zeros((nheads, half_p - half_t, dim), wh.dtype)
        return jnp.concatenate([even, zp, odd, zp], axis=1).reshape(hp, dim)

    wq_t = pack_qk(w[0], head_dim ** -0.5).T.astype(jnp.bfloat16)    # (dim, hp), scale folded
    wk_t = pack_qk(w[1], 1.0).T.astype(jnp.bfloat16)
    zv = jnp.zeros((nheads, hd_pad - head_dim, dim), w.dtype)
    wv_t = jnp.concatenate([w[2], zv], axis=1).reshape(hp, dim).T.astype(jnp.bfloat16)

    wo = out_w.T.reshape(nheads, head_dim, dim)                      # rows per head
    wo = jnp.concatenate([wo, jnp.zeros((nheads, hd_pad - head_dim, dim), wo.dtype)], axis=1)
    wout_t = wo.reshape(hp, dim).astype(jnp.bfloat16)                # (hp, dim)

    x_bf = x.astype(jnp.bfloat16)

    # --- pass 1: q/k/v projection + rotary, once per token, bf16 outputs ---
    proj_kernel = functools.partial(_proj_rot_kernel, nheads=nheads, hd_pad=hd_pad)
    proj_vmem = (2 * t_tile * dim * 2 + 3 * 2 * dim * hp * 2
                 + 2 * 2 * t_tile * half_p * 4 + 3 * 2 * t_tile * hp * 2
                 + 4 * t_tile * hp * 4)
    q_rot, k_rot, v_pk = pl.pallas_call(
        proj_kernel,
        out_shape=(
            jax.ShapeDtypeStruct((B, T, hp), jnp.bfloat16),
            jax.ShapeDtypeStruct((B, T, hp), jnp.bfloat16),
            jax.ShapeDtypeStruct((B, T, hp), jnp.bfloat16),
        ),
        grid_spec=pltpu.PrefetchScalarGridSpec(
            num_scalar_prefetch=0,
            grid=(B, T // t_tile),
            in_specs=[
                pl.BlockSpec((None, t_tile, dim), lambda b, ti: (b, ti, 0)),   # x (bf16)
                pl.BlockSpec((dim, hp), lambda b, ti: (0, 0)),                 # wq (scaled)
                pl.BlockSpec((dim, hp), lambda b, ti: (0, 0)),                 # wk
                pl.BlockSpec((dim, hp), lambda b, ti: (0, 0)),                 # wv
                pl.BlockSpec((t_tile, half_p), lambda b, ti: (ti, 0)),         # cos
                pl.BlockSpec((t_tile, half_p), lambda b, ti: (ti, 0)),         # sin
            ],
            out_specs=[
                pl.BlockSpec((None, t_tile, hp), lambda b, ti: (b, ti, 0)),    # q rotated
                pl.BlockSpec((None, t_tile, hp), lambda b, ti: (b, ti, 0)),    # k rotated
                pl.BlockSpec((None, t_tile, hp), lambda b, ti: (b, ti, 0)),    # v
            ],
        ),
        compiler_params=pltpu.CompilerParams(
            dimension_semantics=("parallel", "parallel"),
            vmem_limit_bytes=_clamp_vmem_limit(proj_vmem, vmem_cap),
        ),
    )(x_bf, wq_t, wk_t, wv_t, cos_p, sin_p)

    # --- pass 2: attention + fused output projection over query tiles ---
    attn_kernel = functools.partial(_attn_kernel, nheads=nheads, hd_pad=hd_pad)
    attn_vmem = _attn_vmem_bytes(q_tile, T, dim, hp, nheads, attn_bytes)
    y, attn = pl.pallas_call(
        attn_kernel,
        out_shape=(
            jax.ShapeDtypeStruct((B, T, dim), jnp.float32),
            jax.ShapeDtypeStruct((B, nheads, T, T), attn_dtype),
        ),
        grid_spec=pltpu.PrefetchScalarGridSpec(
            num_scalar_prefetch=0,
            grid=(B, n_q_tiles),
            in_specs=[
                pl.BlockSpec((None, q_tile, hp), lambda b, qi: (b, qi, 0)),    # q (rotated)
                pl.BlockSpec((None, T, hp), lambda b, qi: (b, 0, 0)),          # k (qi-invariant)
                pl.BlockSpec((None, T, hp), lambda b, qi: (b, 0, 0)),          # v (qi-invariant)
                pl.BlockSpec((hp, dim), lambda b, qi: (0, 0)),                 # wout
            ],
            out_specs=[
                pl.BlockSpec((None, q_tile, dim), lambda b, qi: (b, qi, 0)),            # y
                pl.BlockSpec((None, nheads, q_tile, T), lambda b, qi: (b, 0, qi, 0)),   # attn
            ],
            scratch_shapes=[pltpu.VMEM((q_tile, hp), jnp.bfloat16)],           # per-head ctx
        ),
        compiler_params=pltpu.CompilerParams(
            dimension_semantics=("parallel", "parallel"),
            vmem_limit_bytes=_clamp_vmem_limit(attn_vmem, vmem_cap),
        ),
    )(q_rot, k_rot, v_pk, wout_t)
    return y, attn


# ---------------------------------------------------------------------------
# Pure-JAX mirror of the PyTorch forward (interleaved rotary) for validation.
# ---------------------------------------------------------------------------
def slow_mha_ref(x, qkv_proj, out_w, nheads, head_dim, theta=10000.0):
    B, T, dim = x.shape
    hp = jax.lax.Precision.HIGHEST
    speed = theta ** (-(jnp.arange(0, dim, 2)[: dim // 2].astype(jnp.float32) / dim))
    freqs = jnp.outer(jnp.arange(T, dtype=jnp.float32), speed)
    cos, sin = jnp.cos(freqs), jnp.sin(freqs)

    qkv = jnp.einsum('btd,ahd->btah', x, qkv_proj, precision=hp)
    qkv = qkv.reshape(B, T, 3 * nheads, head_dim)
    q, k, v = jnp.split(qkv, 3, axis=-2)

    def rot(u):
        ur = u.reshape(B, T, nheads, head_dim // 2, 2)
        e, o = ur[..., 0], ur[..., 1]
        c = cos[None, :, None, :]
        s = sin[None, :, None, :]
        return jnp.stack([e * c - o * s, e * s + o * c],
                         axis=-1).reshape(B, T, nheads, head_dim)

    q, k = rot(q), rot(k)
    logits = jnp.einsum('btnh,bsnh->bnts', q, k, precision=hp) * head_dim ** -0.5
    mask = jnp.tril(jnp.ones((T, T), dtype=bool))
    logits = jnp.where(mask[None, None], logits, -jnp.inf)
    attn = jax.nn.softmax(logits, axis=-1)
    out = jnp.einsum('bnts,bsnd->btnd', attn, v, precision=hp)
    y = jnp.einsum('bth,dh->btd', out.reshape(B, T, -1), out_w, precision=hp)
    return y, attn


if __name__ == "__main__":
    # Small shapes consistent with the module's forward constraints:
    # dim == head_dim (module default head_dim=128) and T == maxseqlen.
    B, nheads, head_dim = 2, 2, 128
    dim = head_dim
    maxseqlen = 128
    T = maxseqlen
    hdim = nheads * head_dim

    key = jax.random.PRNGKey(0)
    kx, kqkv, kout = jax.random.split(key, 3)

    # Deterministic parameter init matching the module's init distributions.
    std = 0.5 * dim ** (-0.5)
    bound = 3 ** 0.5 * std
    qkv_proj = jax.random.uniform(kqkv, (3, hdim, dim), jnp.float32, -bound, bound)
    out_bound = 1.0 / hdim ** 0.5  # nn.Linear(hdim, dim) default init bound
    out_w = jax.random.uniform(kout, (dim, hdim), jnp.float32, -out_bound, out_bound)

    x = jax.random.normal(kx, (B, T, dim), jnp.float32)

    # q_tile=64 -> 2 query tiles per batch, exercising the tiled grid path.
    y, attn = slow_mha_pallas(x, qkv_proj, out_w, nheads, head_dim, q_tile=64)
    jax.block_until_ready((y, attn))

    y_exp, attn_exp = slow_mha_ref(x, qkv_proj, out_w, nheads, head_dim)
    # bf16 MXU inputs / bf16 attn storage vs HIGHEST-precision f32 reference.
    np.testing.assert_allclose(np.asarray(y, dtype=np.float32),
                               np.asarray(y_exp, dtype=np.float32),
                               rtol=2e-2, atol=2e-2)
    np.testing.assert_allclose(np.asarray(attn.astype(jnp.float32)),
                               np.asarray(attn_exp, dtype=np.float32),
                               rtol=2e-2, atol=2e-2)

    print("KERNEL_OK")
</pallas_src>

<mosaic_0001>
module attributes {stable_mosaic.version = 11 : i64} {
  func.func @_proj_rot_kernel(%arg0: i32, %arg1: i32, %arg2: memref<1x64x128xbf16, #tpu.memory_space<vmem>>, %arg3: memref<128x256xbf16, #tpu.memory_space<vmem>>, %arg4: memref<128x256xbf16, #tpu.memory_space<vmem>>, %arg5: memref<128x256xbf16, #tpu.memory_space<vmem>>, %arg6: memref<64x64xf32, #tpu.memory_space<vmem>>, %arg7: memref<64x64xf32, #tpu.memory_space<vmem>>, %arg8: memref<1x64x256xbf16, #tpu.memory_space<vmem>>, %arg9: memref<1x64x256xbf16, #tpu.memory_space<vmem>>, %arg10: memref<1x64x256xbf16, #tpu.memory_space<vmem>>) attributes {dimension_semantics = [#tpu.dimension_semantics<parallel>, #tpu.dimension_semantics<parallel>], iteration_bounds = array<i64: 2, 2>, scalar_prefetch = 0 : i64, scratch_operands = 0 : i64, tpu.core_type = #tpu.core_type<tc>, window_params = [{transform_indices = @transform_0, window_bounds = array<i64: 1, 64, 128>}, {pipeline_mode = #tpu.pipeline_mode<synchronous>, transform_indices = @transform_1, window_bounds = array<i64: 128, 256>}, {pipeline_mode = #tpu.pipeline_mode<synchronous>, transform_indices = @transform_2, window_bounds = array<i64: 128, 256>}, {pipeline_mode = #tpu.pipeline_mode<synchronous>, transform_indices = @transform_3, window_bounds = array<i64: 128, 256>}, {transform_indices = @transform_4, window_bounds = array<i64: 64, 64>}, {transform_indices = @transform_5, window_bounds = array<i64: 64, 64>}, {transform_indices = @transform_6, window_bounds = array<i64: 1, 64, 256>}, {transform_indices = @transform_7, window_bounds = array<i64: 1, 64, 256>}, {transform_indices = @transform_8, window_bounds = array<i64: 1, 64, 256>}]} {
    %c0 = arith.constant 0 : index
    %c0_0 = arith.constant 0 : index
    %c0_1 = arith.constant 0 : index
    %0 = vector.load %arg2[%c0, %c0_0, %c0_1] : memref<1x64x128xbf16, #tpu.memory_space<vmem>>, vector<1x64x128xbf16>
    %1 = vector.shape_cast %0 : vector<1x64x128xbf16> to vector<64x128xbf16>
    %c0_2 = arith.constant 0 : index
    %c0_3 = arith.constant 0 : index
    %2 = vector.load %arg3[%c0_2, %c0_3] : memref<128x256xbf16, #tpu.memory_space<vmem>>, vector<128x256xbf16>
    %cst = arith.constant dense<0.000000e+00> : vector<64x256xf32>
    %3 = tpu.matmul %1, %2, %cst {dimension_numbers = #tpu.dot_dimension_numbers<[1], [0], [0], [1], [0, 0, 1, 1], [], []>} : vector<64x128xbf16>, vector<128x256xbf16>, vector<64x256xf32> -> vector<64x256xf32>
    %c0_4 = arith.constant 0 : index
    %c0_5 = arith.constant 0 : index
    %4 = vector.load %arg4[%c0_4, %c0_5] : memref<128x256xbf16, #tpu.memory_space<vmem>>, vector<128x256xbf16>
    %cst_6 = arith.constant dense<0.000000e+00> : vector<64x256xf32>
    %5 = tpu.matmul %1, %4, %cst_6 {dimension_numbers = #tpu.dot_dimension_numbers<[1], [0], [0], [1], [0, 0, 1, 1], [], []>} : vector<64x128xbf16>, vector<128x256xbf16>, vector<64x256xf32> -> vector<64x256xf32>
    %c0_7 = arith.constant 0 : index
    %c0_8 = arith.constant 0 : index
    %6 = vector.load %arg5[%c0_7, %c0_8] : memref<128x256xbf16, #tpu.memory_space<vmem>>, vector<128x256xbf16>
    %cst_9 = arith.constant dense<0.000000e+00> : vector<64x256xf32>
    %7 = tpu.matmul %1, %6, %cst_9 {dimension_numbers = #tpu.dot_dimension_numbers<[1], [0], [0], [1], [0, 0, 1, 1], [], []>} : vector<64x128xbf16>, vector<128x256xbf16>, vector<64x256xf32> -> vector<64x256xf32>
    %c0_10 = arith.constant 0 : index
    %c0_11 = arith.constant 0 : index
    %8 = vector.load %arg6[%c0_10, %c0_11] : memref<64x64xf32, #tpu.memory_space<vmem>>, vector<64x64xf32>
    %c0_12 = arith.constant 0 : index
    %c0_13 = arith.constant 0 : index
    %9 = vector.load %arg7[%c0_12, %c0_13] : memref<64x64xf32, #tpu.memory_space<vmem>>, vector<64x64xf32>
    %10 = vector.extract_strided_slice %3 {offsets = [0, 0], sizes = [64, 128], strides = [1, 1]} : vector<64x256xf32> to vector<64x128xf32>
    %11 = vector.extract_strided_slice %10 {offsets = [0, 0], sizes = [64, 64], strides = [1, 1]} : vector<64x128xf32> to vector<64x64xf32>
    %12 = vector.extract_strided_slice %10 {offsets = [0, 64], sizes = [64, 64], strides = [1, 1]} : vector<64x128xf32> to vector<64x64xf32>
    %13 = arith.mulf %11, %8 : vector<64x64xf32>
    %14 = arith.mulf %12, %9 : vector<64x64xf32>
    %15 = arith.subf %13, %14 : vector<64x64xf32>
    %16 = arith.mulf %12, %8 : vector<64x64xf32>
    %17 = arith.mulf %11, %9 : vector<64x64xf32>
    %18 = arith.addf %16, %17 : vector<64x64xf32>
    %19 = tpu.concatenate %15, %18 in 1 : vector<64x64xf32>, vector<64x64xf32> -> vector<64x128xf32>
    %20 = arith.truncf %19 : vector<64x128xf32> to vector<64x128xbf16>
    %c0_14 = arith.constant 0 : index
    %c0_15 = arith.constant 0 : index
    %c0_16 = arith.constant 0 : index
    %21 = vector.load %arg8[%c0_14, %c0_15, %c0_16] : memref<1x64x256xbf16, #tpu.memory_space<vmem>>, vector<1x64x128xbf16>
    %22 = vector.shape_cast %21 : vector<1x64x128xbf16> to vector<64x128xbf16>
    %23 = vector.shape_cast %20 : vector<64x128xbf16> to vector<1x64x128xbf16>
    tpu.vector_store %arg8[%c0_14, %c0_15, %c0_16], %23 {strides = array<i32>} : memref<1x64x256xbf16, #tpu.memory_space<vmem>>, vector<1x64x128xbf16>,
    %24 = vector.extract_strided_slice %5 {offsets = [0, 0], sizes = [64, 128], strides = [1, 1]} : vector<64x256xf32> to vector<64x128xf32>
    %25 = vector.extract_strided_slice %24 {offsets = [0, 0], sizes = [64, 64], strides = [1, 1]} : vector<64x128xf32> to vector<64x64xf32>
    %26 = vector.extract_strided_slice %24 {offsets = [0, 64], sizes = [64, 64], strides = [1, 1]} : vector<64x128xf32> to vector<64x64xf32>
    %27 = arith.mulf %25, %8 : vector<64x64xf32>
    %28 = arith.mulf %26, %9 : vector<64x64xf32>
    %29 = arith.subf %27, %28 : vector<64x64xf32>
    %30 = arith.mulf %26, %8 : vector<64x64xf32>
    %31 = arith.mulf %25, %9 : vector<64x64xf32>
    %32 = arith.addf %30, %31 : vector<64x64xf32>
    %33 = tpu.concatenate %29, %32 in 1 : vector<64x64xf32>, vector<64x64xf32> -> vector<64x128xf32>
    %34 = arith.truncf %33 : vector<64x128xf32> to vector<64x128xbf16>
    %c0_17 = arith.constant 0 : index
    %c0_18 = arith.constant 0 : index
    %c0_19 = arith.constant 0 : index
    %35 = vector.load %arg9[%c0_17, %c0_18, %c0_19] : memref<1x64x256xbf16, #tpu.memory_space<vmem>>, vector<1x64x128xbf16>
    %36 = vector.shape_cast %35 : vector<1x64x128xbf16> to vector<64x128xbf16>
    %37 = vector.shape_cast %34 : vector<64x128xbf16> to vector<1x64x128xbf16>
    tpu.vector_store %arg9[%c0_17, %c0_18, %c0_19], %37 {strides = array<i32>} : memref<1x64x256xbf16, #tpu.memory_space<vmem>>, vector<1x64x128xbf16>,
    %38 = vector.extract_strided_slice %3 {offsets = [0, 128], sizes = [64, 128], strides = [1, 1]} : vector<64x256xf32> to vector<64x128xf32>
    %39 = vector.extract_strided_slice %38 {offsets = [0, 0], sizes = [64, 64], strides = [1, 1]} : vector<64x128xf32> to vector<64x64xf32>
    %40 = vector.extract_strided_slice %38 {offsets = [0, 64], sizes = [64, 64], strides = [1, 1]} : vector<64x128xf32> to vector<64x64xf32>
    %41 = arith.mulf %39, %8 : vector<64x64xf32>
    %42 = arith.mulf %40, %9 : vector<64x64xf32>
    %43 = arith.subf %41, %42 : vector<64x64xf32>
    %44 = arith.mulf %40, %8 : vector<64x64xf32>
    %45 = arith.mulf %39, %9 : vector<64x64xf32>
    %46 = arith.addf %44, %45 : vector<64x64xf32>
    %47 = tpu.concatenate %43, %46 in 1 : vector<64x64xf32>, vector<64x64xf32> -> vector<64x128xf32>
    %48 = arith.truncf %47 : vector<64x128xf32> to vector<64x128xbf16>
    %c0_20 = arith.constant 0 : index
    %c0_21 = arith.constant 0 : index
    %c128 = arith.constant 128 : index
    %49 = vector.load %arg8[%c0_20, %c0_21, %c128] : memref<1x64x256xbf16, #tpu.memory_space<vmem>>, vector<1x64x128xbf16>
    %50 = vector.shape_cast %49 : vector<1x64x128xbf16> to vector<64x128xbf16>
    %51 = vector.shape_cast %48 : vector<64x128xbf16> to vector<1x64x128xbf16>
    tpu.vector_store %arg8[%c0_20, %c0_21, %c128], %51 {strides = array<i32>} : memref<1x64x256xbf16, #tpu.memory_space<vmem>>, vector<1x64x128xbf16>,
    %52 = vector.extract_strided_slice %5 {offsets = [0, 128], sizes = [64, 128], strides = [1, 1]} : vector<64x256xf32> to vector<64x128xf32>
    %53 = vector.extract_strided_slice %52 {offsets = [0, 0], sizes = [64, 64], strides = [1, 1]} : vector<64x128xf32> to vector<64x64xf32>
    %54 = vector.extract_strided_slice %52 {offsets = [0, 64], sizes = [64, 64], strides = [1, 1]} : vector<64x128xf32> to vector<64x64xf32>
    %55 = arith.mulf %53, %8 : vector<64x64xf32>
    %56 = arith.mulf %54, %9 : vector<64x64xf32>
    %57 = arith.subf %55, %56 : vector<64x64xf32>
    %58 = arith.mulf %54, %8 : vector<64x64xf32>
    %59 = arith.mulf %53, %9 : vector<64x64xf32>
    %60 = arith.addf %58, %59 : vector<64x64xf32>
    %61 = tpu.concatenate %57, %60 in 1 : vector<64x64xf32>, vector<64x64xf32> -> vector<64x128xf32>
    %62 = arith.truncf %61 : vector<64x128xf32> to vector<64x128xbf16>
    %c0_22 = arith.constant 0 : index
    %c0_23 = arith.constant 0 : index
    %c128_24 = arith.constant 128 : index
    %63 = vector.load %arg9[%c0_22, %c0_23, %c128_24] : memref<1x64x256xbf16, #tpu.memory_space<vmem>>, vector<1x64x128xbf16>
    %64 = vector.shape_cast %63 : vector<1x64x128xbf16> to vector<64x128xbf16>
    %65 = vector.shape_cast %62 : vector<64x128xbf16> to vector<1x64x128xbf16>
    tpu.vector_store %arg9[%c0_22, %c0_23, %c128_24], %65 {strides = array<i32>} : memref<1x64x256xbf16, #tpu.memory_space<vmem>>, vector<1x64x128xbf16>,
    %66 = arith.truncf %7 : vector<64x256xf32> to vector<64x256xbf16>
    %c0_25 = arith.constant 0 : index
    %c0_26 = arith.constant 0 : index
    %c0_27 = arith.constant 0 : index
    %67 = vector.load %arg10[%c0_25, %c0_26, %c0_27] : memref<1x64x256xbf16, #tpu.memory_space<vmem>>, vector<1x64x256xbf16>
    %68 = vector.shape_cast %67 : vector<1x64x256xbf16> to vector<64x256xbf16>
    %69 = vector.shape_cast %66 : vector<64x256xbf16> to vector<1x64x256xbf16>
    tpu.vector_store %arg10[%c0_25, %c0_26, %c0_27], %69 {strides = array<i32>} : memref<1x64x256xbf16, #tpu.memory_space<vmem>>, vector<1x64x256xbf16>,
    return
  }
  func.func @transform_0(%arg0: i32, %arg1: i32) -> (i32, i32, i32) {
    %c0_i32 = arith.constant 0 : i32
    %c0_i32_0 = arith.constant 0 : i32
    return %arg0, %arg1, %c0_i32 : i32, i32, i32
  }
  func.func @transform_1(%arg0: i32, %arg1: i32) -> (i32, i32) {
    %c0_i32 = arith.constant 0 : i32
    %c0_i32_0 = arith.constant 0 : i32
    %c0_i32_1 = arith.constant 0 : i32
    return %c0_i32, %c0_i32_0 : i32, i32
  }
  func.func @transform_2(%arg0: i32, %arg1: i32) -> (i32, i32) {
    %c0_i32 = arith.constant 0 : i32
    %c0_i32_0 = arith.constant 0 : i32
    %c0_i32_1 = arith.constant 0 : i32
    return %c0_i32, %c0_i32_0 : i32, i32
  }
  func.func @transform_3(%arg0: i32, %arg1: i32) -> (i32, i32) {
    %c0_i32 = arith.constant 0 : i32
    %c0_i32_0 = arith.constant 0 : i32
    %c0_i32_1 = arith.constant 0 : i32
    return %c0_i32, %c0_i32_0 : i32, i32
  }
  func.func @transform_4(%arg0: i32, %arg1: i32) -> (i32, i32) {
    %c0_i32 = arith.constant 0 : i32
    %c0_i32_0 = arith.constant 0 : i32
    return %arg1, %c0_i32 : i32, i32
  }
  func.func @transform_5(%arg0: i32, %arg1: i32) -> (i32, i32) {
    %c0_i32 = arith.constant 0 : i32
    %c0_i32_0 = arith.constant 0 : i32
    return %arg1, %c0_i32 : i32, i32
  }
  func.func @transform_6(%arg0: i32, %arg1: i32) -> (i32, i32, i32) {
    %c0_i32 = arith.constant 0 : i32
    %c0_i32_0 = arith.constant 0 : i32
    return %arg0, %arg1, %c0_i32 : i32, i32, i32
  }
  func.func @transform_7(%arg0: i32, %arg1: i32) -> (i32, i32, i32) {
    %c0_i32 = arith.constant 0 : i32
    %c0_i32_0 = arith.constant 0 : i32
    return %arg0, %arg1, %c0_i32 : i32, i32, i32
  }
  func.func @transform_8(%arg0: i32, %arg1: i32) -> (i32, i32, i32) {
    %c0_i32 = arith.constant 0 : i32
    %c0_i32_0 = arith.constant 0 : i32
    return %arg0, %arg1, %c0_i32 : i32, i32, i32
  }
}

</mosaic_0001>

<llo_original>
// kernel: tpu_custom_call.1
$region0: #{tpu_custom_call.1}
  #allocation0 [shape = 'u32[]', space=smem, size = 0x4, offset = 0x4, fixed_abs, tag = 'smem constant byte address 0x4 - core index']
  #allocation1 [shape = 'u32[144,128]{1,0:T(1,128)}', space=vmem, size = 0x12000, scoped, tag = 'internal scratch']
  %s0 = inlined_call_operand.vmem [shape: bf16[2,128,128], index: 0, kind: input, shape index: {}]
  %s1 = inlined_call_operand.vmem [shape: bf16[128,256], index: 1, kind: input, shape index: {}]
  %s2 = inlined_call_operand.vmem [shape: bf16[128,256], index: 2, kind: input, shape index: {}]
  %s3 = inlined_call_operand.hbm [shape: bf16[128,256], index: 3, kind: input, shape index: {}]
  %s4 = inlined_call_operand.vmem [shape: f32[128,64], index: 4, kind: input, shape index: {}]
  %s5 = inlined_call_operand.vmem [shape: f32[128,64], index: 5, kind: input, shape index: {}]
  %s6 = inlined_call_operand.hbm [shape: bf16[2,128,256], index: 6, kind: output, shape index: {0}]
  %s7 = inlined_call_operand.hbm [shape: bf16[2,128,256], index: 7, kind: output, shape index: {1}]
  %s8 = inlined_call_operand.hbm [shape: bf16[2,128,256], index: 8, kind: output, shape index: {2}]
  %9 = xla_tuple %s6, %s7, %s8
  %s10 = sld [smem:[#allocation0]]
  $region77: #{tpu_custom_call.1} parent=0
    _
  %s12 = ssub.s32 1, %s10
  %s13 = scalar_select 0, %s12, %s10
  $region1: #{tpu_custom_call.1} parent=0
    #allocation2 [shape = 'u8[65536]{0}', space=vmem, size = 0x10000, scoped, tag = 'input window, operand 3, single buffered']
    #allocation3 [shape = 's32[2]{0}', space=sflag, size = 0x8, scoped, tag = 'scoped memory for tpu_custom_call.1']
    #allocation4 [shape = 's32[2]{0}', space=sflag, size = 0x8, scoped, tag = 'scoped memory for tpu_custom_call.1']
    #allocation5 [shape = 'u8[65536]{0}', space=vmem, size = 0x10000, scoped, tag = 'output window, operand 0']
    #allocation6 [shape = 'u8[65536]{0}', space=vmem, size = 0x10000, scoped, tag = 'output window, operand 1']
    #allocation7 [shape = 's32[2]{0}', space=sflag, size = 0x8, scoped, tag = 'scoped memory for tpu_custom_call.1']
    #allocation8 [shape = 'u8[65536]{0}', space=vmem, size = 0x10000, scoped, tag = 'output window, operand 2']
    %14 = vsyncpa [#allocation3], 0
    %15 = vsyncpa [#allocation4], 0
    %s16 = scalar_lea.sflag [#allocation4], 1
    %17 = vsyncpa %s16, 0
    %18 = vsyncpa [#allocation7], 0
    %s19 = scalar_lea.sflag [#allocation7], 1
    %20 = vsyncpa %s19, 0
    loop: start=0, step=1, limit=6
    $region2: #{tpu_custom_call.1} parent=1 // loop_pre_header
      _
    $region3: #{tpu_custom_call.1} parent=1 // loop_header
      %s22 = sphi 0, %s26
      %p23 = scmp.ge.s32.totalorder %s22, 6
      %s29 = sphi 0, %s41
      %s30 = sphi 0, %s37
      %s31 = sphi 0, %s29
      %s32 = sphi 0, %s30
      %s33 = sphi 0, %s31
      %s34 = sphi 0, %s32
      %s46 = sphi 0, %s48
      %s49 = sphi 0, %s46
      %s50 = sphi 0, %s49
      %s66 = sphi 0, %s50
      %s70 = sphi 0, %s70
      %s72 = sphi 0, %s70
      %s73 = sphi 0, %s72
      %s87 = sphi 0, %s73
      %s91 = sphi 0, %s91
      %s93 = sphi 0, %s91
      %s94 = sphi 0, %s93
      %s108 = sphi 0, %s94
      %s112 = sphi 0, %s112
      %s114 = sphi 0, %s112
      %s115 = sphi 0, %s114
      %s129 = sphi 0, %s115
      %s135 = sphi 0, %s137
      %s138 = sphi 0, %s135
      %s139 = sphi 0, %s138
      %s155 = sphi 0, %s139
      %s161 = sphi 0, %s163
      %s164 = sphi 0, %s161
      %s165 = sphi 0, %s164
      %s181 = sphi 0, %s165
      %s189 = sphi 0, %s191
      %s192 = sphi 0, %s189
      %s193 = sphi 0, %s192
      %s209 = sphi 0, %s193
      %s217 = sphi 0, %s219
      %s220 = sphi 0, %s217
      %s221 = sphi 0, %s220
      %s237 = sphi 0, %s221
      %s245 = sphi 0, %s247
      %s248 = sphi 0, %s245
      %s249 = sphi 0, %s248
      %s265 = sphi 0, %s249
    $region4: #{tpu_custom_call.1} parent=1 // loop_header_branch
      %25 = sbr.rel (%p23) target = $region8
    $region5: #{tpu_custom_call.1} parent=1 // loop_body
      %s27 = ssub.s32 %s22, 1
      %s28 = ssub.s32 %s22, 2
      %s35 = sadd.s32 1, %s30
      %p36 = scmp.ge.s32.totalorder %s35, 2
      %s37 = scalar_select %p36, 0, %s35
      %s38 = sadd.s32 1, %s29
      %s39 = scalar_select %p36, %s38, %s29
      %p40 = scmp.ge.s32.totalorder %s39, 2
      %s41 = scalar_select %p40, 0, %s39
      %s42 = ssub.s32 %s29, %s41
      %s43 = ssub.s32 %s30, %s37
      %s44 = sor.u32 %s42, %s43
      %p45 = scmp.eq.s32.totalorder %s44, 0
      %s47 = sadd.s32 %s46, 1
      %s48 = scalar_select %p45, %s46, %s47
      %p51 = pneg %p45
      %p52 = scmp.eq.s32.totalorder %s22, 3
      %p53 = por %p51, %p52
      %p54 = scmp.ne.s32.totalorder %s46, %s49
      %p55 = scmp.eq.s32.totalorder %s22, 0
      %p56 = por %p54, %p55
      %p57 = scmp.ne.s32.totalorder %s46, %s49
      %p58 = scmp.eq.s32.totalorder %s27, 3
      %p59 = por %p57, %p58
      %p60 = scmp.ne.s32.totalorder %s49, %s50
      %p61 = scmp.eq.s32.totalorder %s27, 0
      %p62 = por %p60, %p61
      %p63 = scmp.ne.s32.totalorder %s49, %s50
      %p64 = scmp.eq.s32.totalorder %s28, 3
      %p65 = por %p63, %p64
      %p67 = scmp.ne.s32.totalorder %s50, %s66
      %p68 = scmp.eq.s32.totalorder %s28, 0
      %p69 = por %p67, %p68
      %s71 = sadd.s32 %s70, 1
      %p74 = scmp.eq.s32.totalorder %s22, 3
      %p75 = scmp.ne.s32.totalorder %s70, %s72
      %p76 = scmp.eq.s32.totalorder %s22, 0
      %p77 = por %p75, %p76
      %p78 = scmp.ne.s32.totalorder %s70, %s72
      %p79 = scmp.eq.s32.totalorder %s27, 3
      %p80 = por %p78, %p79
      %p81 = scmp.ne.s32.totalorder %s72, %s73
      %p82 = scmp.eq.s32.totalorder %s27, 0
      %p83 = por %p81, %p82
      %p84 = scmp.ne.s32.totalorder %s72, %s73
      %p85 = scmp.eq.s32.totalorder %s28, 3
      %p86 = por %p84, %p85
      %p88 = scmp.ne.s32.totalorder %s73, %s87
      %p89 = scmp.eq.s32.totalorder %s28, 0
      %p90 = por %p88, %p89
      %s92 = sadd.s32 %s91, 1
      %p95 = scmp.eq.s32.totalorder %s22, 3
      %p96 = scmp.ne.s32.totalorder %s91, %s93
      %p97 = scmp.eq.s32.totalorder %s22, 0
      %p98 = por %p96, %p97
      %p99 = scmp.ne.s32.totalorder %s91, %s93
      %p100 = scmp.eq.s32.totalorder %s27, 3
      %p101 = por %p99, %p100
      %p102 = scmp.ne.s32.totalorder %s93, %s94
      %p103 = scmp.eq.s32.totalorder %s27, 0
      %p104 = por %p102, %p103
      %p105 = scmp.ne.s32.totalorder %s93, %s94
      %p106 = scmp.eq.s32.totalorder %s28, 3
      %p107 = por %p105, %p106
      %p109 = scmp.ne.s32.totalorder %s94, %s108
      %p110 = scmp.eq.s32.totalorder %s28, 0
      %p111 = por %p109, %p110
      %s113 = sadd.s32 %s112, 1
      %p116 = scmp.eq.s32.totalorder %s22, 3
      %p117 = scmp.ne.s32.totalorder %s112, %s114
      %p118 = scmp.eq.s32.totalorder %s22, 0
      %p119 = por %p117, %p118
      %p120 = scmp.ne.s32.totalorder %s112, %s114
      %p121 = scmp.eq.s32.totalorder %s27, 3
      %p122 = por %p120, %p121
      %p123 = scmp.ne.s32.totalorder %s114, %s115
      %p124 = scmp.eq.s32.totalorder %s27, 0
      %p125 = por %p123, %p124
      %p126 = scmp.ne.s32.totalorder %s114, %s115
      %p127 = scmp.eq.s32.totalorder %s28, 3
      %p128 = por %p126, %p127
      %p130 = scmp.ne.s32.totalorder %s115, %s129
      %p131 = scmp.eq.s32.totalorder %s28, 0
      %p132 = por %p130, %p131
      %s133 = ssub.s32 %s30, %s37
      %p134 = scmp.eq.s32.totalorder %s133, 0
      %s136 = sadd.s32 %s135, 1
      %s137 = scalar_select %p134, %s135, %s136
      %p140 = pneg %p134
      %p141 = scmp.eq.s32.totalorder %s22, 3
      %p142 = por %p140, %p141
      %p143 = scmp.ne.s32.totalorder %s135, %s138
      %p144 = scmp.eq.s32.totalorder %s22, 0
      %p145 = por %p143, %p144
      %p146 = scmp.ne.s32.totalorder %s135, %s138
      %p147 = scmp.eq.s32.totalorder %s27, 3
      %p148 = por %p146, %p147
      %p149 = scmp.ne.s32.totalorder %s138, %s139
      %p150 = scmp.eq.s32.totalorder %s27, 0
      %p151 = por %p149, %p150
      %p152 = scmp.ne.s32.totalorder %s138, %s139
      %p153 = scmp.eq.s32.totalorder %s28, 3
      %p154 = por %p152, %p153
      %p156 = scmp.ne.s32.totalorder %s139, %s155
      %p157 = scmp.eq.s32.totalorder %s28, 0
      %p158 = por %p156, %p157
      %s159 = ssub.s32 %s30, %s37
      %p160 = scmp.eq.s32.totalorder %s159, 0
      %s162 = sadd.s32 %s161, 1
      %s163 = scalar_select %p160, %s161, %s162
      %p166 = pneg %p160
      %p167 = scmp.eq.s32.totalorder %s22, 3
      %p168 = por %p166, %p167
      %p169 = scmp.ne.s32.totalorder %s161, %s164
      %p170 = scmp.eq.s32.totalorder %s22, 0
      %p171 = por %p169, %p170
      %p172 = scmp.ne.s32.totalorder %s161, %s164
      %p173 = scmp.eq.s32.totalorder %s27, 3
      %p174 = por %p172, %p173
      %p175 = scmp.ne.s32.totalorder %s164, %s165
      %p176 = scmp.eq.s32.totalorder %s27, 0
      %p177 = por %p175, %p176
      %p178 = scmp.ne.s32.totalorder %s164, %s165
      %p179 = scmp.eq.s32.totalorder %s28, 3
      %p180 = por %p178, %p179
      %p182 = scmp.ne.s32.totalorder %s165, %s181
      %p183 = scmp.eq.s32.totalorder %s28, 0
      %p184 = por %p182, %p183
      %s185 = ssub.s32 %s29, %s41
      %s186 = ssub.s32 %s30, %s37
      %s187 = sor.u32 %s185, %s186
      %p188 = scmp.eq.s32.totalorder %s187, 0
      %s190 = sadd.s32 %s189, 1
      %s191 = scalar_select %p188, %s189, %s190
      %p194 = pneg %p188
      %p195 = scmp.eq.s32.totalorder %s22, 3
      %p196 = por %p194, %p195
      %p197 = scmp.ne.s32.totalorder %s189, %s192
      %p198 = scmp.eq.s32.totalorder %s22, 0
      %p199 = por %p197, %p198
      %p200 = scmp.ne.s32.totalorder %s189, %s192
      %p201 = scmp.eq.s32.totalorder %s27, 3
      %p202 = por %p200, %p201
      %p203 = scmp.ne.s32.totalorder %s192, %s193
      %p204 = scmp.eq.s32.totalorder %s27, 0
      %p205 = por %p203, %p204
      %p206 = scmp.ne.s32.totalorder %s192, %s193
      %p207 = scmp.eq.s32.totalorder %s28, 3
      %p208 = por %p206, %p207
      %p210 = scmp.ne.s32.totalorder %s193, %s209
      %p211 = scmp.eq.s32.totalorder %s28, 0
      %p212 = por %p210, %p211
      %s213 = ssub.s32 %s29, %s41
      %s214 = ssub.s32 %s30, %s37
      %s215 = sor.u32 %s213, %s214
      %p216 = scmp.eq.s32.totalorder %s215, 0
      %s218 = sadd.s32 %s217, 1
      %s219 = scalar_select %p216, %s217, %s218
      %p222 = pneg %p216
      %p223 = scmp.eq.s32.totalorder %s22, 3
      %p224 = por %p222, %p223
      %p225 = scmp.ne.s32.totalorder %s217, %s220
      %p226 = scmp.eq.s32.totalorder %s22, 0
      %p227 = por %p225, %p226
      %p228 = scmp.ne.s32.totalorder %s217, %s220
      %p229 = scmp.eq.s32.totalorder %s27, 3
      %p230 = por %p228, %p229
      %p231 = scmp.ne.s32.totalorder %s220, %s221
      %p232 = scmp.eq.s32.totalorder %s27, 0
      %p233 = por %p231, %p232
      %p234 = scmp.ne.s32.totalorder %s220, %s221
      %p235 = scmp.eq.s32.totalorder %s28, 3
      %p236 = por %p234, %p235
      %p238 = scmp.ne.s32.totalorder %s221, %s237
      %p239 = scmp.eq.s32.totalorder %s28, 0
      %p240 = por %p238, %p239
      %s241 = ssub.s32 %s29, %s41
      %s242 = ssub.s32 %s30, %s37
      %s243 = sor.u32 %s241, %s242
      %p244 = scmp.eq.s32.totalorder %s243, 0
      %s246 = sadd.s32 %s245, 1
      %s247 = scalar_select %p244, %s245, %s246
      %p250 = pneg %p244
      %p251 = scmp.eq.s32.totalorder %s22, 3
      %p252 = por %p250, %p251
      %p253 = scmp.ne.s32.totalorder %s245, %s248
      %p254 = scmp.eq.s32.totalorder %s22, 0
      %p255 = por %p253, %p254
      %p256 = scmp.ne.s32.totalorder %s245, %s248
      %p257 = scmp.eq.s32.totalorder %s27, 3
      %p258 = por %p256, %p257
      %p259 = scmp.ne.s32.totalorder %s248, %s249
      %p260 = scmp.eq.s32.totalorder %s27, 0
      %p261 = por %p259, %p260
      %p262 = scmp.ne.s32.totalorder %s248, %s249
      %p263 = scmp.eq.s32.totalorder %s28, 3
      %p264 = por %p262, %p263
      %p266 = scmp.ne.s32.totalorder %s249, %s265
      %p267 = scmp.eq.s32.totalorder %s28, 0
      %p268 = por %p266, %p267
      %p269 = scmp.le.s32.totalorder 1, %s22
      %p270 = scmp.lt.s32.totalorder %s22, 5
      %p271 = pnand %p269, %p270
      %p272 = pneg %p271
      // Predicated region
      $region9: #{tpu_custom_call.1} parent=5 // pred_check
        _
      $region10: #{tpu_custom_call.1} parent=5 // pred_check_branch
        %274 = sbr.rel (%p271) target = $region12
      $region11: #{tpu_custom_call.1} parent=5 // pred_region
        %s275 = ssub.s32 %s22, 1
        // Predicated region
        $region13: #{tpu_custom_call.1} parent=11 // pred_check
          %p276 = pneg %p83
        $region14: #{tpu_custom_call.1} parent=11 // pred_check_branch
          %278 = sbr.rel (%p276) target = $region16
        $region15: #{tpu_custom_call.1} parent=11 // pred_region
          _
        $region16: #{tpu_custom_call.1} parent=11 // pred_fallthru
          _
        // Predicated region
        $region17: #{tpu_custom_call.1} parent=11 // pred_check
          %p279 = pneg %p104
        $region18: #{tpu_custom_call.1} parent=11 // pred_check_branch
          %281 = sbr.rel (%p279) target = $region20
        $region19: #{tpu_custom_call.1} parent=11 // pred_region
          _
        $region20: #{tpu_custom_call.1} parent=11 // pred_fallthru
          _
        // Predicated region
        $region21: #{tpu_custom_call.1} parent=11 // pred_check
          %p282 = pneg %p125
        $region22: #{tpu_custom_call.1} parent=11 // pred_check_branch
          %284 = sbr.rel (%p282) target = $region24
        $region23: #{tpu_custom_call.1} parent=11 // pred_region
          %s286 = ssub.s32 2048, 2048
          %287 = vsyncadd [#allocation3], %s286
          %s288 = sshll.u32 [#allocation2], 4
          %s289 = int_to_ptr.vmem [resolvable:$true] %s288
          %294 = dma.hbm_to_vmem [thread:$0]  %s3, 2048, %s289, [#allocation3], 128, 128, 8
        $region24: #{tpu_custom_call.1} parent=11 // pred_fallthru
          _
      $region12: #{tpu_custom_call.1} parent=5 // pred_fallthru
        _
      %p295 = scmp.lt.s32.totalorder %s22, 4
      // Predicated region
      $region25: #{tpu_custom_call.1} parent=5 // pred_check
        %p296 = pneg %p295
      $region26: #{tpu_custom_call.1} parent=5 // pred_check_branch
        %298 = sbr.rel (%p296) target = $region28
      $region27: #{tpu_custom_call.1} parent=5 // pred_region
        // Predicated region
        $region29: #{tpu_custom_call.1} parent=27 // pred_check
          %p299 = pneg %p56
        $region30: #{tpu_custom_call.1} parent=27 // pred_check_branch
          %301 = sbr.rel (%p299) target = $region32
        $region31: #{tpu_custom_call.1} parent=27 // pred_region
          %s302 = smul.u32 8, %s30
          %p303 = scmp.lt.s32.totalorder %s29, 1
          %s304 = scalar_select %p303, %s29, 1
          %p305 = scmp.lt.s32.totalorder %s302, 15
          %s306 = scalar_select %p305, %s302, 15
          %s307 = smul.addr %s304, 16
          %s308 = sadd.s32 %s306, %s307
          %s309 = smul.addr %s308, 4
          %s310 = scalar_lea.vmem %s0, %s309
          %s311 = smul.u32 8, %s30
        $region32: #{tpu_custom_call.1} parent=27 // pred_fallthru
          _
        // Predicated region
        $region33: #{tpu_custom_call.1} parent=27 // pred_check
          %p312 = pneg %p145
        $region34: #{tpu_custom_call.1} parent=27 // pred_check_branch
          %314 = sbr.rel (%p312) target = $region36
        $region35: #{tpu_custom_call.1} parent=27 // pred_region
          %s315 = smul.u32 8, %s30
          %p316 = scmp.lt.s32.totalorder %s315, 15
          %s317 = scalar_select %p316, %s315, 15
          %s318 = smul.addr %s317, 8
          %s319 = scalar_lea.vmem %s4, %s318
          %s320 = smul.u32 8, %s30
        $region36: #{tpu_custom_call.1} parent=27 // pred_fallthru
          _
        // Predicated region
        $region37: #{tpu_custom_call.1} parent=27 // pred_check
          %p321 = pneg %p171
        $region38: #{tpu_custom_call.1} parent=27 // pred_check_branch
          %323 = sbr.rel (%p321) target = $region40
        $region39: #{tpu_custom_call.1} parent=27 // pred_region
          %s324 = smul.u32 8, %s30
          %p325 = scmp.lt.s32.totalorder %s324, 15
          %s326 = scalar_select %p325, %s324, 15
          %s327 = smul.addr %s326, 8
          %s328 = scalar_lea.vmem %s5, %s327
          %s329 = smul.u32 8, %s30
        $region40: #{tpu_custom_call.1} parent=27 // pred_fallthru
          _
      $region28: #{tpu_custom_call.1} parent=5 // pred_fallthru
        _
      %p330 = scmp.le.s32.totalorder 1, %s22
      %p331 = scmp.lt.s32.totalorder %s22, 5
      %p332 = pnand %p330, %p331
      %p333 = pneg %p332
      // Predicated region
      $region41: #{tpu_custom_call.1} parent=5 // pred_check
        _
      $region42: #{tpu_custom_call.1} parent=5 // pred_check_branch
        %335 = sbr.rel (%p332) target = $region44
      $region43: #{tpu_custom_call.1} parent=5 // pred_region
        %s336 = ssub.s32 %s22, 1
        // Predicated region
        $region45: #{tpu_custom_call.1} parent=43 // pred_check
          %p337 = pneg %p125
        $region46: #{tpu_custom_call.1} parent=43 // pred_check_branch
          %339 = sbr.rel (%p337) target = $region48
        $region47: #{tpu_custom_call.1} parent=43 // pred_region
          %340 = dma.done [#allocation3], 2048
        $region48: #{tpu_custom_call.1} parent=43 // pred_fallthru
          _
        %s341 = smul.u32 8, %s32
        %p342 = scmp.lt.s32.totalorder %s31, 1
        %s343 = scalar_select %p342, %s31, 1
        %p344 = scmp.lt.s32.totalorder %s341, 15
        %s345 = scalar_select %p344, %s341, 15
        %s346 = smul.addr %s343, 16
        %s347 = sadd.s32 %s345, %s346
        %s348 = smul.addr %s347, 4
        %s349 = scalar_lea.vmem %s0, %s348
        %p350 = pneg %p62
        %p351 = pneg %p59
        %p352 = pneg %p83
        %p353 = pneg %p80
        %p354 = pneg %p104
        %p355 = pneg %p101
        %p356 = pneg %p125
        %p357 = pneg %p122
        %s358 = smul.u32 8, %s32
        %p359 = scmp.lt.s32.totalorder %s358, 15
        %s360 = scalar_select %p359, %s358, 15
        %s361 = smul.addr %s360, 8
        %s362 = scalar_lea.vmem %s4, %s361
        %p363 = pneg %p151
        %p364 = pneg %p148
        %s365 = smul.u32 8, %s32
        %p366 = scmp.lt.s32.totalorder %s365, 15
        %s367 = scalar_select %p366, %s365, 15
        %s368 = smul.addr %s367, 8
        %s369 = scalar_lea.vmem %s5, %s368
        %p370 = pneg %p177
        %p371 = pneg %p174
        %p372 = pneg %p205
        %p373 = pneg %p202
        %s374 = sand.u32 %s192, 1
        %s375 = scalar_lea.sflag [#allocation4], %s374
        %s376 = sand.u32 %s192, 1
        %s377 = smul.addr %s376, 64
        %s378 = scalar_lea.vmem [#allocation5], %s377
        %p379 = pneg %p233
        %p380 = pneg %p230
        %s381 = sand.u32 %s27, 1
        %s382 = scalar_lea.sflag [#allocation7], %s381
        %s383 = sand.u32 %s220, 1
        %s384 = smul.addr %s383, 64
        %s385 = scalar_lea.vmem [#allocation6], %s384
        %p386 = pneg %p261
        %p387 = pneg %p258
        %s388 = sand.u32 %s27, 1
        %s389 = scalar_lea.sflag [#allocation7], %s388
        %s390 = sand.u32 %s248, 1
        %s391 = smul.addr %s390, 64
        %s392 = scalar_lea.vmem [#allocation8], %s391
        %s393 = smul.u32 8, %s32
        %p394 = scmp.lt.s32.totalorder %s31, 1
        %s395 = scalar_select %p394, %s31, 1
        %p396 = scmp.lt.s32.totalorder %s393, 15
        %s397 = scalar_select %p396, %s393, 15
        %s398 = smul.addr %s395, 16
        %s399 = sadd.s32 %s397, %s398
        %s400 = smul.addr %s399, 4
        %s401 = scalar_lea.vmem %s0, %s400
        %s402 = smul.u32 8, %s32
        %s403 = smul.u32 8, %s32
        %p404 = scmp.lt.s32.totalorder %s403, 15
        %s405 = scalar_select %p404, %s403, 15
        %s406 = smul.addr %s405, 8
        %s407 = scalar_lea.vmem %s4, %s406
        %s408 = smul.u32 8, %s32
        %s409 = smul.u32 8, %s32
        %p410 = scmp.lt.s32.totalorder %s409, 15
        %s411 = scalar_select %p410, %s409, 15
        %s412 = smul.addr %s411, 8
        %s413 = scalar_lea.vmem %s5, %s412
        %s414 = smul.u32 8, %s32
        %s415 = smul.u32 8, %s32
        %s416 = smul.u32 8, %s32
        %s417 = smul.u32 8, %s32
        %v419 = vld [vmem:[%s401] sm:$0xf]
        %v420 = vld [vmem:[%s401 + $0x4] sm:$0xf]
        %v421 = vld [vmem:[%s401 + $0x8] sm:$0xf]
        %v422 = vld [vmem:[%s401 + $0xc] sm:$0xf]
        %v423 = vld [vmem:[%s401 + $0x10] sm:$0xf]
        %v424 = vld [vmem:[%s401 + $0x14] sm:$0xf]
        %v425 = vld [vmem:[%s401 + $0x18] sm:$0xf]
        %v426 = vld [vmem:[%s401 + $0x1c] sm:$0xf]
        %v427 = vld [vmem:[%s1] sm:$0xff]
        %v428 = vld [vmem:[%s1 + $0x8] sm:$0xff]
        %v429 = vld [vmem:[%s1 + $0x10] sm:$0xff]
        %v430 = vld [vmem:[%s1 + $0x18] sm:$0xff]
        %v431 = vld [vmem:[%s1 + $0x20] sm:$0xff]
        %v432 = vld [vmem:[%s1 + $0x28] sm:$0xff]
        %v433 = vld [vmem:[%s1 + $0x30] sm:$0xff]
        %v434 = vld [vmem:[%s1 + $0x38] sm:$0xff]
        %v435 = vld [vmem:[%s1 + $0x40] sm:$0xff]
        %v436 = vld [vmem:[%s1 + $0x48] sm:$0xff]
        %v437 = vld [vmem:[%s1 + $0x50] sm:$0xff]
        %v438 = vld [vmem:[%s1 + $0x58] sm:$0xff]
        %v439 = vld [vmem:[%s1 + $0x60] sm:$0xff]
        %v440 = vld [vmem:[%s1 + $0x68] sm:$0xff]
        %v441 = vld [vmem:[%s1 + $0x70] sm:$0xff]
        %v442 = vld [vmem:[%s1 + $0x78] sm:$0xff]
        %v451 = vunpack.c.l.b16 %v419
        %v452 = vunpack.c.l.b16 %v420
        %v453 = vunpack.c.l.b16 %v421
        %v454 = vunpack.c.l.b16 %v422
        %v455 = vunpack.c.l.b16 %v423
        %v456 = vunpack.c.l.b16 %v424
        %v457 = vunpack.c.l.b16 %v425
        %v458 = vunpack.c.l.b16 %v426
        %v459 = vpack.c.b16 %v452, %v451
        %v460 = vpack.c.b16 %v454, %v453
        %v461 = vpack.c.b16 %v456, %v455
        %v462 = vpack.c.b16 %v458, %v457
        %v483 = vunpack.c.l.b16 %v427
        %v484 = vunpack.c.h.b16 %v427
        %v485 = vunpack.c.l.b16 %v428
        %v486 = vunpack.c.h.b16 %v428
        %v487 = vunpack.c.l.b16 %v429
        %v488 = vunpack.c.h.b16 %v429
        %v489 = vunpack.c.l.b16 %v430
        %v490 = vunpack.c.h.b16 %v430
        %v491 = vunpack.c.l.b16 %v431
        %v492 = vunpack.c.h.b16 %v431
        %v493 = vunpack.c.l.b16 %v432
        %v494 = vunpack.c.h.b16 %v432
        %v495 = vunpack.c.l.b16 %v433
        %v496 = vunpack.c.h.b16 %v433
        %v497 = vunpack.c.l.b16 %v434
        %v498 = vunpack.c.h.b16 %v434
        %v499 = vunpack.c.l.b16 %v435
        %v500 = vunpack.c.h.b16 %v435
        %v501 = vunpack.c.l.b16 %v436
        %v502 = vunpack.c.h.b16 %v436
        %v503 = vunpack.c.l.b16 %v437
        %v504 = vunpack.c.h.b16 %v437
        %v505 = vunpack.c.l.b16 %v438
        %v506 = vunpack.c.h.b16 %v438
        %v507 = vunpack.c.l.b16 %v439
        %v508 = vunpack.c.h.b16 %v439
        %v509 = vunpack.c.l.b16 %v440
        %v510 = vunpack.c.h.b16 %v440
        %v511 = vunpack.c.l.b16 %v441
        %v512 = vunpack.c.h.b16 %v441
        %v513 = vunpack.c.l.b16 %v442
        %v514 = vunpack.c.h.b16 %v442
        %v515 = vpack.c.b16 %v485, %v483
        %v516 = vpack.c.b16 %v486, %v484
        %v517 = vpack.c.b16 %v489, %v487
        %v518 = vpack.c.b16 %v490, %v488
        %v519 = vpack.c.b16 %v493, %v491
        %v520 = vpack.c.b16 %v494, %v492
        %v521 = vpack.c.b16 %v497, %v495
        %v522 = vpack.c.b16 %v498, %v496
        %v523 = vpack.c.b16 %v501, %v499
        %v524 = vpack.c.b16 %v502, %v500
        %v525 = vpack.c.b16 %v505, %v503
        %v526 = vpack.c.b16 %v506, %v504
        %v527 = vpack.c.b16 %v509, %v507
        %v528 = vpack.c.b16 %v510, %v508
        %v529 = vpack.c.b16 %v513, %v511
        %v530 = vpack.c.b16 %v514, %v512
        %547 = vmatprep.subr.bf16.mxu0 %v516
        %548 = vmatpush1.bf16.msra.mxu0 %v515
        %549 = vmatprep.subr.bf16.mxu0 %v518
        %550 = vmatpush1.bf16.msra.mxu0 %v517
        %551 = vmatprep.subr.bf16.mxu0 %v520
        %552 = vmatpush1.bf16.msra.mxu0 %v519
        %553 = vmatprep.subr.bf16.mxu0 %v522
        %554 = vmatpush1.bf16.msra.mxu0 %v521
        %555 = vmatprep.subr.bf16.mxu0 %v524
        %556 = vmatpush1.bf16.msra.mxu0 %v523
        %557 = vmatprep.subr.bf16.mxu0 %v526
        %558 = vmatpush1.bf16.msra.mxu0 %v525
        %559 = vmatprep.subr.bf16.mxu0 %v528
        %560 = vmatpush1.bf16.msra.mxu0 %v527
        %561 = vmatprep.subr.bf16.mxu0 %v530
        %562 = vmatpush1.bf16.msra.mxu0 %v529
        %563 = vmatprep.subr.bf16.mxu0 0
        %564 = vmatpush1.bf16.msra.mxu0 0
        %565 = vmatprep.subr.bf16.mxu0 0
        %566 = vmatpush1.bf16.msra.mxu0 0
        %567 = vmatprep.subr.bf16.mxu0 0
        %568 = vmatpush1.bf16.msra.mxu0 0
        %569 = vmatprep.subr.bf16.mxu0 0
        %570 = vmatpush1.bf16.msra.mxu0 0
        %571 = vmatprep.subr.bf16.mxu0 0
        %572 = vmatpush1.bf16.msra.mxu0 0
        %573 = vmatprep.subr.bf16.mxu0 0
        %574 = vmatpush1.bf16.msra.mxu0 0
        %575 = vmatprep.subr.bf16.mxu0 0
        %576 = vmatpush1.bf16.msra.mxu0 0
        %577 = vmatprep.subr.bf16.mxu0 0
        %578 = vmatpush1.bf16.msra.mxu0 0
        %579 = vmatprep.mubr.bf16.mxu0 0
        %580 = vmatmul.mubr.bf16.gmra.mrb[0].mxu0 %v459
        %v581 = vpop.f32.mrb[0].mxu0
        %v582 = vadd.f32 0.0, %v581
        %v583 = vpop.f32.mrb[0].mxu0
        %v584 = vadd.f32 0.0, %v583
        %v585 = vpop.f32.mrb[0].mxu0
        %v586 = vadd.f32 0.0, %v585
        %v587 = vpop.f32.mrb[0].mxu0
        %v588 = vadd.f32 0.0, %v587
        %589 = vmatprep.mubr.bf16.mxu0 0
        %590 = vmatmul.mubr.bf16.gmra.mrb[0].mxu0 %v460
        %v591 = vpop.f32.mrb[0].mxu0
        %v592 = vadd.f32 0.0, %v591
        %v593 = vpop.f32.mrb[0].mxu0
        %v594 = vadd.f32 0.0, %v593
        %v595 = vpop.f32.mrb[0].mxu0
        %v596 = vadd.f32 0.0, %v595
        %v597 = vpop.f32.mrb[0].mxu0
        %v598 = vadd.f32 0.0, %v597
        %599 = vmatprep.mubr.bf16.mxu0 0
        %600 = vmatmul.mubr.bf16.gmra.mrb[0].mxu0 %v461
        %v601 = vpop.f32.mrb[0].mxu0
        %v602 = vadd.f32 0.0, %v601
        %v603 = vpop.f32.mrb[0].mxu0
        %v604 = vadd.f32 0.0, %v603
        %v605 = vpop.f32.mrb[0].mxu0
        %v606 = vadd.f32 0.0, %v605
        %v607 = vpop.f32.mrb[0].mxu0
        %v608 = vadd.f32 0.0, %v607
        %609 = vmatprep.mubr.bf16.mxu0 0
        %610 = vmatmul.mubr.bf16.gmra.mrb[0].mxu0 %v462
        %v611 = vpop.f32.mrb[0].mxu0
        %v612 = vadd.f32 0.0, %v611
        %v613 = vpop.f32.mrb[0].mxu0
        %v614 = vadd.f32 0.0, %v613
        %v615 = vpop.f32.mrb[0].mxu0
        %v616 = vadd.f32 0.0, %v615
        %v617 = vpop.f32.mrb[0].mxu0
        %v618 = vadd.f32 0.0, %v617
        %619 = vdwg.mxu0
        %v620 = vld [vmem:[%s2] sm:$0xff]
        %v621 = vld [vmem:[%s2 + $0x8] sm:$0xff]
        %v622 = vld [vmem:[%s2 + $0x10] sm:$0xff]
        %v623 = vld [vmem:[%s2 + $0x18] sm:$0xff]
        %v624 = vld [vmem:[%s2 + $0x20] sm:$0xff]
        %v625 = vld [vmem:[%s2 + $0x28] sm:$0xff]
        %v626 = vld [vmem:[%s2 + $0x30] sm:$0xff]
        %v627 = vld [vmem:[%s2 + $0x38] sm:$0xff]
        %v628 = vld [vmem:[%s2 + $0x40] sm:$0xff]
        %v629 = vld [vmem:[%s2 + $0x48] sm:$0xff]
        %v630 = vld [vmem:[%s2 + $0x50] sm:$0xff]
        %v631 = vld [vmem:[%s2 + $0x58] sm:$0xff]
        %v632 = vld [vmem:[%s2 + $0x60] sm:$0xff]
        %v633 = vld [vmem:[%s2 + $0x68] sm:$0xff]
        %v634 = vld [vmem:[%s2 + $0x70] sm:$0xff]
        %v635 = vld [vmem:[%s2 + $0x78] sm:$0xff]
        %v652 = vunpack.c.l.b16 %v620
        %v653 = vunpack.c.h.b16 %v620
        %v654 = vunpack.c.l.b16 %v621
        %v655 = vunpack.c.h.b16 %v621
        %v656 = vunpack.c.l.b16 %v622
        %v657 = vunpack.c.h.b16 %v622
        %v658 = vunpack.c.l.b16 %v623
        %v659 = vunpack.c.h.b16 %v623
        %v660 = vunpack.c.l.b16 %v624
        %v661 = vunpack.c.h.b16 %v624
        %v662 = vunpack.c.l.b16 %v625
        %v663 = vunpack.c.h.b16 %v625
        %v664 = vunpack.c.l.b16 %v626
        %v665 = vunpack.c.h.b16 %v626
        %v666 = vunpack.c.l.b16 %v627
        %v667 = vunpack.c.h.b16 %v627
        %v668 = vunpack.c.l.b16 %v628
        %v669 = vunpack.c.h.b16 %v628
        %v670 = vunpack.c.l.b16 %v629
        %v671 = vunpack.c.h.b16 %v629
        %v672 = vunpack.c.l.b16 %v630
        %v673 = vunpack.c.h.b16 %v630
        %v674 = vunpack.c.l.b16 %v631
        %v675 = vunpack.c.h.b16 %v631
        %v676 = vunpack.c.l.b16 %v632
        %v677 = vunpack.c.h.b16 %v632
        %v678 = vunpack.c.l.b16 %v633
        %v679 = vunpack.c.h.b16 %v633
        %v680 = vunpack.c.l.b16 %v634
        %v681 = vunpack.c.h.b16 %v634
        %v682 = vunpack.c.l.b16 %v635
        %v683 = vunpack.c.h.b16 %v635
        %v684 = vpack.c.b16 %v654, %v652
        %v685 = vpack.c.b16 %v655, %v653
        %v686 = vpack.c.b16 %v658, %v656
        %v687 = vpack.c.b16 %v659, %v657
        %v688 = vpack.c.b16 %v662, %v660
        %v689 = vpack.c.b16 %v663, %v661
        %v690 = vpack.c.b16 %v666, %v664
        %v691 = vpack.c.b16 %v667, %v665
        %v692 = vpack.c.b16 %v670, %v668
        %v693 = vpack.c.b16 %v671, %v669
        %v694 = vpack.c.b16 %v674, %v672
        %v695 = vpack.c.b16 %v675, %v673
        %v696 = vpack.c.b16 %v678, %v676
        %v697 = vpack.c.b16 %v679, %v677
        %v698 = vpack.c.b16 %v682, %v680
        %v699 = vpack.c.b16 %v683, %v681
        %716 = vmatprep.subr.bf16.mxu0 %v685
        %717 = vmatpush1.bf16.msra.mxu0 %v684
        %718 = vmatprep.subr.bf16.mxu0 %v687
        %719 = vmatpush1.bf16.msra.mxu0 %v686
        %720 = vmatprep.subr.bf16.mxu0 %v689
        %721 = vmatpush1.bf16.msra.mxu0 %v688
        %722 = vmatprep.subr.bf16.mxu0 %v691
        %723 = vmatpush1.bf16.msra.mxu0 %v690
        %724 = vmatprep.subr.bf16.mxu0 %v693
        %725 = vmatpush1.bf16.msra.mxu0 %v692
        %726 = vmatprep.subr.bf16.mxu0 %v695
        %727 = vmatpush1.bf16.msra.mxu0 %v694
        %728 = vmatprep.subr.bf16.mxu0 %v697
        %729 = vmatpush1.bf16.msra.mxu0 %v696
        %730 = vmatprep.subr.bf16.mxu0 %v699
        %731 = vmatpush1.bf16.msra.mxu0 %v698
        %732 = vmatprep.subr.bf16.mxu0 0
        %733 = vmatpush1.bf16.msra.mxu0 0
        %734 = vmatprep.subr.bf16.mxu0 0
        %735 = vmatpush1.bf16.msra.mxu0 0
        %736 = vmatprep.subr.bf16.mxu0 0
        %737 = vmatpush1.bf16.msra.mxu0 0
        %738 = vmatprep.subr.bf16.mxu0 0
        %739 = vmatpush1.bf16.msra.mxu0 0
        %740 = vmatprep.subr.bf16.mxu0 0
        %741 = vmatpush1.bf16.msra.mxu0 0
        %742 = vmatprep.subr.bf16.mxu0 0
        %743 = vmatpush1.bf16.msra.mxu0 0
        %744 = vmatprep.subr.bf16.mxu0 0
        %745 = vmatpush1.bf16.msra.mxu0 0
        %746 = vmatprep.subr.bf16.mxu0 0
        %747 = vmatpush1.bf16.msra.mxu0 0
        %748 = vmatprep.mubr.bf16.mxu0 0
        %749 = vmatmul.mubr.bf16.gmra.mrb[0].mxu0 %v459
        %v750 = vpop.f32.mrb[0].mxu0
        %v751 = vadd.f32 0.0, %v750
        %v752 = vpop.f32.mrb[0].mxu0
        %v753 = vadd.f32 0.0, %v752
        %v754 = vpop.f32.mrb[0].mxu0
        %v755 = vadd.f32 0.0, %v754
        %v756 = vpop.f32.mrb[0].mxu0
        %v757 = vadd.f32 0.0, %v756
        %758 = vmatprep.mubr.bf16.mxu0 0
        %759 = vmatmul.mubr.bf16.gmra.mrb[0].mxu0 %v460
        %v760 = vpop.f32.mrb[0].mxu0
        %v761 = vadd.f32 0.0, %v760
        %v762 = vpop.f32.mrb[0].mxu0
        %v763 = vadd.f32 0.0, %v762
        %v764 = vpop.f32.mrb[0].mxu0
        %v765 = vadd.f32 0.0, %v764
        %v766 = vpop.f32.mrb[0].mxu0
        %v767 = vadd.f32 0.0, %v766
        %768 = vmatprep.mubr.bf16.mxu0 0
        %769 = vmatmul.mubr.bf16.gmra.mrb[0].mxu0 %v461
        %v770 = vpop.f32.mrb[0].mxu0
        %v771 = vadd.f32 0.0, %v770
        %v772 = vpop.f32.mrb[0].mxu0
        %v773 = vadd.f32 0.0, %v772
        %v774 = vpop.f32.mrb[0].mxu0
        %v775 = vadd.f32 0.0, %v774
        %v776 = vpop.f32.mrb[0].mxu0
        %v777 = vadd.f32 0.0, %v776
        %778 = vmatprep.mubr.bf16.mxu0 0
        %779 = vmatmul.mubr.bf16.gmra.mrb[0].mxu0 %v462
        %v780 = vpop.f32.mrb[0].mxu0
        %v781 = vadd.f32 0.0, %v780
        %v782 = vpop.f32.mrb[0].mxu0
        %v783 = vadd.f32 0.0, %v782
        %v784 = vpop.f32.mrb[0].mxu0
        %v785 = vadd.f32 0.0, %v784
        %v786 = vpop.f32.mrb[0].mxu0
        %v787 = vadd.f32 0.0, %v786
        %788 = vdwg.mxu0
        %v789 = vld [vmem:[#allocation2] sm:$0xff]
        %v790 = vld [vmem:[#allocation2 + $0x8] sm:$0xff]
        %v791 = vld [vmem:[#allocation2 + $0x10] sm:$0xff]
        %v792 = vld [vmem:[#allocation2 + $0x18] sm:$0xff]
        %v793 = vld [vmem:[#allocation2 + $0x20] sm:$0xff]
        %v794 = vld [vmem:[#allocation2 + $0x28] sm:$0xff]
        %v795 = vld [vmem:[#allocation2 + $0x30] sm:$0xff]
        %v796 = vld [vmem:[#allocation2 + $0x38] sm:$0xff]
        %v797 = vld [vmem:[#allocation2 + $0x40] sm:$0xff]
        %v798 = vld [vmem:[#allocation2 + $0x48] sm:$0xff]
        %v799 = vld [vmem:[#allocation2 + $0x50] sm:$0xff]
        %v800 = vld [vmem:[#allocation2 + $0x58] sm:$0xff]
        %v801 = vld [vmem:[#allocation2 + $0x60] sm:$0xff]
        %v802 = vld [vmem:[#allocation2 + $0x68] sm:$0xff]
        %v803 = vld [vmem:[#allocation2 + $0x70] sm:$0xff]
        %v804 = vld [vmem:[#allocation2 + $0x78] sm:$0xff]
        %v821 = vunpack.c.l.b16 %v789
        %v822 = vunpack.c.h.b16 %v789
        %v823 = vunpack.c.l.b16 %v790
        %v824 = vunpack.c.h.b16 %v790
        %v825 = vunpack.c.l.b16 %v791
        %v826 = vunpack.c.h.b16 %v791
        %v827 = vunpack.c.l.b16 %v792
        %v828 = vunpack.c.h.b16 %v792
        %v829 = vunpack.c.l.b16 %v793
        %v830 = vunpack.c.h.b16 %v793
        %v831 = vunpack.c.l.b16 %v794
        %v832 = vunpack.c.h.b16 %v794
        %v833 = vunpack.c.l.b16 %v795
        %v834 = vunpack.c.h.b16 %v795
        %v835 = vunpack.c.l.b16 %v796
        %v836 = vunpack.c.h.b16 %v796
        %v837 = vunpack.c.l.b16 %v797
        %v838 = vunpack.c.h.b16 %v797
        %v839 = vunpack.c.l.b16 %v798
        %v840 = vunpack.c.h.b16 %v798
        %v841 = vunpack.c.l.b16 %v799
        %v842 = vunpack.c.h.b16 %v799
        %v843 = vunpack.c.l.b16 %v800
        %v844 = vunpack.c.h.b16 %v800
        %v845 = vunpack.c.l.b16 %v801
        %v846 = vunpack.c.h.b16 %v801
        %v847 = vunpack.c.l.b16 %v802
        %v848 = vunpack.c.h.b16 %v802
        %v849 = vunpack.c.l.b16 %v803
        %v850 = vunpack.c.h.b16 %v803
        %v851 = vunpack.c.l.b16 %v804
        %v852 = vunpack.c.h.b16 %v804
        %v853 = vpack.c.b16 %v823, %v821
        %v854 = vpack.c.b16 %v824, %v822
        %v855 = vpack.c.b16 %v827, %v825
        %v856 = vpack.c.b16 %v828, %v826
        %v857 = vpack.c.b16 %v831, %v829
        %v858 = vpack.c.b16 %v832, %v830
        %v859 = vpack.c.b16 %v835, %v833
        %v860 = vpack.c.b16 %v836, %v834
        %v861 = vpack.c.b16 %v839, %v837
        %v862 = vpack.c.b16 %v840, %v838
        %v863 = vpack.c.b16 %v843, %v841
        %v864 = vpack.c.b16 %v844, %v842
        %v865 = vpack.c.b16 %v847, %v845
        %v866 = vpack.c.b16 %v848, %v846
        %v867 = vpack.c.b16 %v851, %v849
        %v868 = vpack.c.b16 %v852, %v850
        %885 = vmatprep.subr.bf16.mxu0 %v854
        %886 = vmatpush1.bf16.msra.mxu0 %v853
        %887 = vmatprep.subr.bf16.mxu0 %v856
        %888 = vmatpush1.bf16.msra.mxu0 %v855
        %889 = vmatprep.subr.bf16.mxu0 %v858
        %890 = vmatpush1.bf16.msra.mxu0 %v857
        %891 = vmatprep.subr.bf16.mxu0 %v860
        %892 = vmatpush1.bf16.msra.mxu0 %v859
        %893 = vmatprep.subr.bf16.mxu0 %v862
        %894 = vmatpush1.bf16.msra.mxu0 %v861
        %895 = vmatprep.subr.bf16.mxu0 %v864
        %896 = vmatpush1.bf16.msra.mxu0 %v863
        %897 = vmatprep.subr.bf16.mxu0 %v866
        %898 = vmatpush1.bf16.msra.mxu0 %v865
        %899 = vmatprep.subr.bf16.mxu0 %v868
        %900 = vmatpush1.bf16.msra.mxu0 %v867
        %901 = vmatprep.subr.bf16.mxu0 0
        %902 = vmatpush1.bf16.msra.mxu0 0
        %903 = vmatprep.subr.bf16.mxu0 0
        %904 = vmatpush1.bf16.msra.mxu0 0
        %905 = vmatprep.subr.bf16.mxu0 0
        %906 = vmatpush1.bf16.msra.mxu0 0
        %907 = vmatprep.subr.bf16.mxu0 0
        %908 = vmatpush1.bf16.msra.mxu0 0
        %909 = vmatprep.subr.bf16.mxu0 0
        %910 = vmatpush1.bf16.msra.mxu0 0
        %911 = vmatprep.subr.bf16.mxu0 0
        %912 = vmatpush1.bf16.msra.mxu0 0
        %913 = vmatprep.subr.bf16.mxu0 0
        %914 = vmatpush1.bf16.msra.mxu0 0
        %915 = vmatprep.subr.bf16.mxu0 0
        %916 = vmatpush1.bf16.msra.mxu0 0
        %917 = vmatprep.mubr.bf16.mxu0 0
        %918 = vmatmul.mubr.bf16.gmra.mrb[0].mxu0 %v459
        %v919 = vpop.f32.mrb[0].mxu0
        %v920 = vadd.f32 0.0, %v919
        %v921 = vpop.f32.mrb[0].mxu0
        %v922 = vadd.f32 0.0, %v921
        %v923 = vpop.f32.mrb[0].mxu0
        %v924 = vadd.f32 0.0, %v923
        %v925 = vpop.f32.mrb[0].mxu0
        %v926 = vadd.f32 0.0, %v925
        %927 = vmatprep.mubr.bf16.mxu0 0
        %928 = vmatmul.mubr.bf16.gmra.mrb[0].mxu0 %v460
        %v929 = vpop.f32.mrb[0].mxu0
        %v930 = vadd.f32 0.0, %v929
        %v931 = vpop.f32.mrb[0].mxu0
        %v932 = vadd.f32 0.0, %v931
        %v933 = vpop.f32.mrb[0].mxu0
        %v934 = vadd.f32 0.0, %v933
        %v935 = vpop.f32.mrb[0].mxu0
        %v936 = vadd.f32 0.0, %v935
        %937 = vmatprep.mubr.bf16.mxu0 0
        %938 = vmatmul.mubr.bf16.gmra.mrb[0].mxu0 %v461
        %v939 = vpop.f32.mrb[0].mxu0
        %v940 = vadd.f32 0.0, %v939
        %v941 = vpop.f32.mrb[0].mxu0
        %v942 = vadd.f32 0.0, %v941
        %v943 = vpop.f32.mrb[0].mxu0
        %v944 = vadd.f32 0.0, %v943
        %v945 = vpop.f32.mrb[0].mxu0
        %v946 = vadd.f32 0.0, %v945
        %947 = vmatprep.mubr.bf16.mxu0 0
        %948 = vmatmul.mubr.bf16.gmra.mrb[0].mxu0 %v462
        %v949 = vpop.f32.mrb[0].mxu0
        %v950 = vadd.f32 0.0, %v949
        %v951 = vpop.f32.mrb[0].mxu0
        %v952 = vadd.f32 0.0, %v951
        %v953 = vpop.f32.mrb[0].mxu0
        %v954 = vadd.f32 0.0, %v953
        %v955 = vpop.f32.mrb[0].mxu0
        %v956 = vadd.f32 0.0, %v955
        %957 = vdwg.mxu0
        %v958 = vld [vmem:[%s407] sm:$0xff]
        %v959 = vld [vmem:[%s407 + $0x8] sm:$0xff]
        %v960 = vld [vmem:[%s407 + $0x10] sm:$0xff]
        %v961 = vld [vmem:[%s407 + $0x18] sm:$0xff]
        %v962 = vld [vmem:[%s407 + $0x20] sm:$0xff]
        %v963 = vld [vmem:[%s407 + $0x28] sm:$0xff]
        %v964 = vld [vmem:[%s407 + $0x30] sm:$0xff]
        %v965 = vld [vmem:[%s407 + $0x38] sm:$0xff]
        %v966 = vld [vmem:[%s413] sm:$0xff]
        %v967 = vld [vmem:[%s413 + $0x8] sm:$0xff]
        %v968 = vld [vmem:[%s413 + $0x10] sm:$0xff]
        %v969 = vld [vmem:[%s413 + $0x18] sm:$0xff]
        %v970 = vld [vmem:[%s413 + $0x20] sm:$0xff]
        %v971 = vld [vmem:[%s413 + $0x28] sm:$0xff]
        %v972 = vld [vmem:[%s413 + $0x30] sm:$0xff]
        %v973 = vld [vmem:[%s413 + $0x38] sm:$0xff]
        %v974 = vmul.f32 %v582, %v958
        %v975 = vmul.f32 %v586, %v959
        %v976 = vmul.f32 %v592, %v960
        %v977 = vmul.f32 %v596, %v961
        %v978 = vmul.f32 %v602, %v962
        %v979 = vmul.f32 %v606, %v963
        %v980 = vmul.f32 %v612, %v964
        %v981 = vmul.f32 %v616, %v965
        %990 = vrot.lane.b32.xlu0 %v966, 64
        %v991 = vpop.permute.xlu0 %990
        %992 = vrot.lane.b32.xlu0 %v967, 64
        %v993 = vpop.permute.xlu0 %992
        %994 = vrot.lane.b32.xlu0 %v968, 64
        %v995 = vpop.permute.xlu0 %994
        %996 = vrot.lane.b32.xlu0 %v969, 64
        %v997 = vpop.permute.xlu0 %996
        %998 = vrot.lane.b32.xlu0 %v970, 64
        %v999 = vpop.permute.xlu0 %998
        %1000 = vrot.lane.b32.xlu0 %v971, 64
        %v1001 = vpop.permute.xlu0 %1000
        %1002 = vrot.lane.b32.xlu0 %v972, 64
        %v1003 = vpop.permute.xlu0 %1002
        %1004 = vrot.lane.b32.xlu0 %v973, 64
        %v1005 = vpop.permute.xlu0 %1004
        %v1014 = vmul.f32 %v582, %v991
        %v1015 = vmul.f32 %v586, %v993
        %v1016 = vmul.f32 %v592, %v995
        %v1017 = vmul.f32 %v596, %v997
        %v1018 = vmul.f32 %v602, %v999
        %v1019 = vmul.f32 %v606, %v1001
        %v1020 = vmul.f32 %v612, %v1003
        %v1021 = vmul.f32 %v616, %v1005
        %1030 = vrot.lane.b32.xlu0 %v1014, 64
        %v1031 = vpop.permute.xlu0 %1030
        %1032 = vrot.lane.b32.xlu0 %v1015, 64
        %v1033 = vpop.permute.xlu0 %1032
        %1034 = vrot.lane.b32.xlu0 %v1016, 64
        %v1035 = vpop.permute.xlu0 %1034
        %1036 = vrot.lane.b32.xlu0 %v1017, 64
        %v1037 = vpop.permute.xlu0 %1036
        %1038 = vrot.lane.b32.xlu0 %v1018, 64
        %v1039 = vpop.permute.xlu0 %1038
        %1040 = vrot.lane.b32.xlu0 %v1019, 64
        %v1041 = vpop.permute.xlu0 %1040
        %1042 = vrot.lane.b32.xlu0 %v1020, 64
        %v1043 = vpop.permute.xlu0 %1042
        %1044 = vrot.lane.b32.xlu0 %v1021, 64
        %v1045 = vpop.permute.xlu0 %1044
        %v1054 = vsub.f32 %v974, %v1031
        %v1055 = vsub.f32 %v975, %v1033
        %v1056 = vsub.f32 %v976, %v1035
        %v1057 = vsub.f32 %v977, %v1037
        %v1058 = vsub.f32 %v978, %v1039
        %v1059 = vsub.f32 %v979, %v1041
        %v1060 = vsub.f32 %v980, %v1043
        %v1061 = vsub.f32 %v981, %v1045
        %1070 = vrot.lane.b32.xlu0 %v958, 64
        %v1071 = vpop.permute.xlu0 %1070
        %1072 = vrot.lane.b32.xlu0 %v959, 64
        %v1073 = vpop.permute.xlu0 %1072
        %1074 = vrot.lane.b32.xlu0 %v960, 64
        %v1075 = vpop.permute.xlu0 %1074
        %1076 = vrot.lane.b32.xlu0 %v961, 64
        %v1077 = vpop.permute.xlu0 %1076
        %1078 = vrot.lane.b32.xlu0 %v962, 64
        %v1079 = vpop.permute.xlu0 %1078
        %1080 = vrot.lane.b32.xlu0 %v963, 64
        %v1081 = vpop.permute.xlu0 %1080
        %1082 = vrot.lane.b32.xlu0 %v964, 64
        %v1083 = vpop.permute.xlu0 %1082
        %1084 = vrot.lane.b32.xlu0 %v965, 64
        %v1085 = vpop.permute.xlu0 %1084
        %v1094 = vmul.f32 %v582, %v1071
        %v1095 = vmul.f32 %v586, %v1073
        %v1096 = vmul.f32 %v592, %v1075
        %v1097 = vmul.f32 %v596, %v1077
        %v1098 = vmul.f32 %v602, %v1079
        %v1099 = vmul.f32 %v606, %v1081
        %v1100 = vmul.f32 %v612, %v1083
        %v1101 = vmul.f32 %v616, %v1085
        %v1102 = vmul.f32 %v582, %v966
        %v1103 = vmul.f32 %v586, %v967
        %v1104 = vmul.f32 %v592, %v968
        %v1105 = vmul.f32 %v596, %v969
        %v1106 = vmul.f32 %v602, %v970
        %v1107 = vmul.f32 %v606, %v971
        %v1108 = vmul.f32 %v612, %v972
        %v1109 = vmul.f32 %v616, %v973
        %1118 = vrot.lane.b32.xlu0 %v1102, 64
        %v1119 = vpop.permute.xlu0 %1118
        %1120 = vrot.lane.b32.xlu0 %v1103, 64
        %v1121 = vpop.permute.xlu0 %1120
        %1122 = vrot.lane.b32.xlu0 %v1104, 64
        %v1123 = vpop.permute.xlu0 %1122
        %1124 = vrot.lane.b32.xlu0 %v1105, 64
        %v1125 = vpop.permute.xlu0 %1124
        %1126 = vrot.lane.b32.xlu0 %v1106, 64
        %v1127 = vpop.permute.xlu0 %1126
        %1128 = vrot.lane.b32.xlu0 %v1107, 64
        %v1129 = vpop.permute.xlu0 %1128
        %1130 = vrot.lane.b32.xlu0 %v1108, 64
        %v1131 = vpop.permute.xlu0 %1130
        %1132 = vrot.lane.b32.xlu0 %v1109, 64
        %v1133 = vpop.permute.xlu0 %1132
        %v1142 = vadd.f32 %v1094, %v1119
        %v1143 = vadd.f32 %v1095, %v1121
        %v1144 = vadd.f32 %v1096, %v1123
        %v1145 = vadd.f32 %v1097, %v1125
        %v1146 = vadd.f32 %v1098, %v1127
        %v1147 = vadd.f32 %v1099, %v1129
        %v1148 = vadd.f32 %v1100, %v1131
        %v1149 = vadd.f32 %v1101, %v1133
        %vm1150 = vcmask 523264
        %v1151 = vsel %vm1150, %v1054, %v1142
        %v1152 = vsel %vm1150, %v1055, %v1143
        %v1153 = vsel %vm1150, %v1056, %v1144
        %v1154 = vsel %vm1150, %v1057, %v1145
        %v1155 = vsel %vm1150, %v1058, %v1146
        %v1156 = vsel %vm1150, %v1059, %v1147
        %v1157 = vsel %vm1150, %v1060, %v1148
        %v1158 = vsel %vm1150, %v1061, %v1149
        %v1159 = vpack.c.bf16 %v1152, %v1151
        %v1160 = vpack.c.bf16 %v1154, %v1153
        %v1161 = vpack.c.bf16 %v1156, %v1155
        %v1162 = vpack.c.bf16 %v1158, %v1157
        %v1167 = vunpack.c.l.b16 %v1159
        %v1168 = vunpack.c.h.b16 %v1159
        %v1169 = vunpack.c.l.b16 %v1160
        %v1170 = vunpack.c.h.b16 %v1160
        %v1171 = vunpack.c.l.b16 %v1161
        %v1172 = vunpack.c.h.b16 %v1161
        %v1173 = vunpack.c.l.b16 %v1162
        %v1174 = vunpack.c.h.b16 %v1162
        %v1175 = vpack.c.b16 %v1167, %v1167
        %v1176 = vpack.c.b16 %v1168, %v1168
        %v1177 = vpack.c.b16 %v1169, %v1169
        %v1178 = vpack.c.b16 %v1170, %v1170
        %v1179 = vpack.c.b16 %v1171, %v1171
        %v1180 = vpack.c.b16 %v1172, %v1172
        %v1181 = vpack.c.b16 %v1173, %v1173
        %v1182 = vpack.c.b16 %v1174, %v1174
        %1191 = vst [vmem:[%s378] sm:$0xf] %v1175
        %1192 = vst [vmem:[%s378 + $0x8] sm:$0xf] %v1176
        %1193 = vst [vmem:[%s378 + $0x10] sm:$0xf] %v1177
        %1194 = vst [vmem:[%s378 + $0x18] sm:$0xf] %v1178
        %1195 = vst [vmem:[%s378 + $0x20] sm:$0xf] %v1179
        %1196 = vst [vmem:[%s378 + $0x28] sm:$0xf] %v1180
        %1197 = vst [vmem:[%s378 + $0x30] sm:$0xf] %v1181
        %1198 = vst [vmem:[%s378 + $0x38] sm:$0xf] %v1182
        %v1199 = vmul.f32 %v751, %v958
        %v1200 = vmul.f32 %v755, %v959
        %v1201 = vmul.f32 %v761, %v960
        %v1202 = vmul.f32 %v765, %v961
        %v1203 = vmul.f32 %v771, %v962
        %v1204 = vmul.f32 %v775, %v963
        %v1205 = vmul.f32 %v781, %v964
        %v1206 = vmul.f32 %v785, %v965
        %v1207 = vmul.f32 %v751, %v991
        %v1208 = vmul.f32 %v755, %v993
        %v1209 = vmul.f32 %v761, %v995
        %v1210 = vmul.f32 %v765, %v997
        %v1211 = vmul.f32 %v771, %v999
        %v1212 = vmul.f32 %v775, %v1001
        %v1213 = vmul.f32 %v781, %v1003
        %v1214 = vmul.f32 %v785, %v1005
        %1223 = vrot.lane.b32.xlu0 %v1207, 64
        %v1224 = vpop.permute.xlu0 %1223
        %1225 = vrot.lane.b32.xlu0 %v1208, 64
        %v1226 = vpop.permute.xlu0 %1225
        %1227 = vrot.lane.b32.xlu0 %v1209, 64
        %v1228 = vpop.permute.xlu0 %1227
        %1229 = vrot.lane.b32.xlu0 %v1210, 64
        %v1230 = vpop.permute.xlu0 %1229
        %1231 = vrot.lane.b32.xlu0 %v1211, 64
        %v1232 = vpop.permute.xlu0 %1231
        %1233 = vrot.lane.b32.xlu0 %v1212, 64
        %v1234 = vpop.permute.xlu0 %1233
        %1235 = vrot.lane.b32.xlu0 %v1213, 64
        %v1236 = vpop.permute.xlu0 %1235
        %1237 = vrot.lane.b32.xlu0 %v1214, 64
        %v1238 = vpop.permute.xlu0 %1237
        %v1247 = vsub.f32 %v1199, %v1224
        %v1248 = vsub.f32 %v1200, %v1226
        %v1249 = vsub.f32 %v1201, %v1228
        %v1250 = vsub.f32 %v1202, %v1230
        %v1251 = vsub.f32 %v1203, %v1232
        %v1252 = vsub.f32 %v1204, %v1234
        %v1253 = vsub.f32 %v1205, %v1236
        %v1254 = vsub.f32 %v1206, %v1238
        %v1255 = vmul.f32 %v751, %v1071
        %v1256 = vmul.f32 %v755, %v1073
        %v1257 = vmul.f32 %v761, %v1075
        %v1258 = vmul.f32 %v765, %v1077
        %v1259 = vmul.f32 %v771, %v1079
        %v1260 = vmul.f32 %v775, %v1081
        %v1261 = vmul.f32 %v781, %v1083
        %v1262 = vmul.f32 %v785, %v1085
        %v1263 = vmul.f32 %v751, %v966
        %v1264 = vmul.f32 %v755, %v967
        %v1265 = vmul.f32 %v761, %v968
        %v1266 = vmul.f32 %v765, %v969
        %v1267 = vmul.f32 %v771, %v970
        %v1268 = vmul.f32 %v775, %v971
        %v1269 = vmul.f32 %v781, %v972
        %v1270 = vmul.f32 %v785, %v973
        %1279 = vrot.lane.b32.xlu0 %v1263, 64
        %v1280 = vpop.permute.xlu0 %1279
        %1281 = vrot.lane.b32.xlu0 %v1264, 64
        %v1282 = vpop.permute.xlu0 %1281
        %1283 = vrot.lane.b32.xlu0 %v1265, 64
        %v1284 = vpop.permute.xlu0 %1283
        %1285 = vrot.lane.b32.xlu0 %v1266, 64
        %v1286 = vpop.permute.xlu0 %1285
        %1287 = vrot.lane.b32.xlu0 %v1267, 64
        %v1288 = vpop.permute.xlu0 %1287
        %1289 = vrot.lane.b32.xlu0 %v1268, 64
        %v1290 = vpop.permute.xlu0 %1289
        %1291 = vrot.lane.b32.xlu0 %v1269, 64
        %v1292 = vpop.permute.xlu0 %1291
        %1293 = vrot.lane.b32.xlu0 %v1270, 64
        %v1294 = vpop.permute.xlu0 %1293
        %v1303 = vadd.f32 %v1255, %v1280
        %v1304 = vadd.f32 %v1256, %v1282
        %v1305 = vadd.f32 %v1257, %v1284
        %v1306 = vadd.f32 %v1258, %v1286
        %v1307 = vadd.f32 %v1259, %v1288
        %v1308 = vadd.f32 %v1260, %v1290
        %v1309 = vadd.f32 %v1261, %v1292
        %v1310 = vadd.f32 %v1262, %v1294
        %v1311 = vsel %vm1150, %v1247, %v1303
        %v1312 = vsel %vm1150, %v1248, %v1304
        %v1313 = vsel %vm1150, %v1249, %v1305
        %v1314 = vsel %vm1150, %v1250, %v1306
        %v1315 = vsel %vm1150, %v1251, %v1307
        %v1316 = vsel %vm1150, %v1252, %v1308
        %v1317 = vsel %vm1150, %v1253, %v1309
        %v1318 = vsel %vm1150, %v1254, %v1310
        %v1319 = vpack.c.bf16 %v1312, %v1311
        %v1320 = vpack.c.bf16 %v1314, %v1313
        %v1321 = vpack.c.bf16 %v1316, %v1315
        %v1322 = vpack.c.bf16 %v1318, %v1317
        %v1327 = vunpack.c.l.b16 %v1319
        %v1328 = vunpack.c.h.b16 %v1319
        %v1329 = vunpack.c.l.b16 %v1320
        %v1330 = vunpack.c.h.b16 %v1320
        %v1331 = vunpack.c.l.b16 %v1321
        %v1332 = vunpack.c.h.b16 %v1321
        %v1333 = vunpack.c.l.b16 %v1322
        %v1334 = vunpack.c.h.b16 %v1322
        %v1335 = vpack.c.b16 %v1327, %v1327
        %v1336 = vpack.c.b16 %v1328, %v1328
        %v1337 = vpack.c.b16 %v1329, %v1329
        %v1338 = vpack.c.b16 %v1330, %v1330
        %v1339 = vpack.c.b16 %v1331, %v1331
        %v1340 = vpack.c.b16 %v1332, %v1332
        %v1341 = vpack.c.b16 %v1333, %v1333
        %v1342 = vpack.c.b16 %v1334, %v1334
        %1351 = vst [vmem:[%s385] sm:$0xf] %v1335
        %1352 = vst [vmem:[%s385 + $0x8] sm:$0xf] %v1336
        %1353 = vst [vmem:[%s385 + $0x10] sm:$0xf] %v1337
        %1354 = vst [vmem:[%s385 + $0x18] sm:$0xf] %v1338
        %1355 = vst [vmem:[%s385 + $0x20] sm:$0xf] %v1339
        %1356 = vst [vmem:[%s385 + $0x28] sm:$0xf] %v1340
        %1357 = vst [vmem:[%s385 + $0x30] sm:$0xf] %v1341
        %1358 = vst [vmem:[%s385 + $0x38] sm:$0xf] %v1342
        %v1359 = vmul.f32 %v584, %v958
        %v1360 = vmul.f32 %v588, %v959
        %v1361 = vmul.f32 %v594, %v960
        %v1362 = vmul.f32 %v598, %v961
        %v1363 = vmul.f32 %v604, %v962
        %v1364 = vmul.f32 %v608, %v963
        %v1365 = vmul.f32 %v614, %v964
        %v1366 = vmul.f32 %v618, %v965
        %v1367 = vmul.f32 %v584, %v991
        %v1368 = vmul.f32 %v588, %v993
        %v1369 = vmul.f32 %v594, %v995
        %v1370 = vmul.f32 %v598, %v997
        %v1371 = vmul.f32 %v604, %v999
        %v1372 = vmul.f32 %v608, %v1001
        %v1373 = vmul.f32 %v614, %v1003
        %v1374 = vmul.f32 %v618, %v1005
        %1383 = vrot.lane.b32.xlu0 %v1367, 64
        %v1384 = vpop.permute.xlu0 %1383
        %1385 = vrot.lane.b32.xlu0 %v1368, 64
        %v1386 = vpop.permute.xlu0 %1385
        %1387 = vrot.lane.b32.xlu0 %v1369, 64
        %v1388 = vpop.permute.xlu0 %1387
        %1389 = vrot.lane.b32.xlu0 %v1370, 64
        %v1390 = vpop.permute.xlu0 %1389
        %1391 = vrot.lane.b32.xlu0 %v1371, 64
        %v1392 = vpop.permute.xlu0 %1391
        %1393 = vrot.lane.b32.xlu0 %v1372, 64
        %v1394 = vpop.permute.xlu0 %1393
        %1395 = vrot.lane.b32.xlu0 %v1373, 64
        %v1396 = vpop.permute.xlu0 %1395
        %1397 = vrot.lane.b32.xlu0 %v1374, 64
        %v1398 = vpop.permute.xlu0 %1397
        %v1407 = vsub.f32 %v1359, %v1384
        %v1408 = vsub.f32 %v1360, %v1386
        %v1409 = vsub.f32 %v1361, %v1388
        %v1410 = vsub.f32 %v1362, %v1390
        %v1411 = vsub.f32 %v1363, %v1392
        %v1412 = vsub.f32 %v1364, %v1394
        %v1413 = vsub.f32 %v1365, %v1396
        %v1414 = vsub.f32 %v1366, %v1398
        %v1415 = vmul.f32 %v584, %v1071
        %v1416 = vmul.f32 %v588, %v1073
        %v1417 = vmul.f32 %v594, %v1075
        %v1418 = vmul.f32 %v598, %v1077
        %v1419 = vmul.f32 %v604, %v1079
        %v1420 = vmul.f32 %v608, %v1081
        %v1421 = vmul.f32 %v614, %v1083
        %v1422 = vmul.f32 %v618, %v1085
        %v1423 = vmul.f32 %v584, %v966
        %v1424 = vmul.f32 %v588, %v967
        %v1425 = vmul.f32 %v594, %v968
        %v1426 = vmul.f32 %v598, %v969
        %v1427 = vmul.f32 %v604, %v970
        %v1428 = vmul.f32 %v608, %v971
        %v1429 = vmul.f32 %v614, %v972
        %v1430 = vmul.f32 %v618, %v973
        %1439 = vrot.lane.b32.xlu0 %v1423, 64
        %v1440 = vpop.permute.xlu0 %1439
        %1441 = vrot.lane.b32.xlu0 %v1424, 64
        %v1442 = vpop.permute.xlu0 %1441
        %1443 = vrot.lane.b32.xlu0 %v1425, 64
        %v1444 = vpop.permute.xlu0 %1443
        %1445 = vrot.lane.b32.xlu0 %v1426, 64
        %v1446 = vpop.permute.xlu0 %1445
        %1447 = vrot.lane.b32.xlu0 %v1427, 64
        %v1448 = vpop.permute.xlu0 %1447
        %1449 = vrot.lane.b32.xlu0 %v1428, 64
        %v1450 = vpop.permute.xlu0 %1449
        %1451 = vrot.lane.b32.xlu0 %v1429, 64
        %v1452 = vpop.permute.xlu0 %1451
        %1453 = vrot.lane.b32.xlu0 %v1430, 64
        %v1454 = vpop.permute.xlu0 %1453
        %v1463 = vadd.f32 %v1415, %v1440
        %v1464 = vadd.f32 %v1416, %v1442
        %v1465 = vadd.f32 %v1417, %v1444
        %v1466 = vadd.f32 %v1418, %v1446
        %v1467 = vadd.f32 %v1419, %v1448
        %v1468 = vadd.f32 %v1420, %v1450
        %v1469 = vadd.f32 %v1421, %v1452
        %v1470 = vadd.f32 %v1422, %v1454
        %v1471 = vsel %vm1150, %v1407, %v1463
        %v1472 = vsel %vm1150, %v1408, %v1464
        %v1473 = vsel %vm1150, %v1409, %v1465
        %v1474 = vsel %vm1150, %v1410, %v1466
        %v1475 = vsel %vm1150, %v1411, %v1467
        %v1476 = vsel %vm1150, %v1412, %v1468
        %v1477 = vsel %vm1150, %v1413, %v1469
        %v1478 = vsel %vm1150, %v1414, %v1470
        %v1479 = vpack.c.bf16 %v1472, %v1471
        %v1480 = vpack.c.bf16 %v1474, %v1473
        %v1481 = vpack.c.bf16 %v1476, %v1475
        %v1482 = vpack.c.bf16 %v1478, %v1477
        %v1487 = vunpack.c.l.b16 %v1479
        %v1488 = vunpack.c.h.b16 %v1479
        %v1489 = vunpack.c.l.b16 %v1480
        %v1490 = vunpack.c.h.b16 %v1480
        %v1491 = vunpack.c.l.b16 %v1481
        %v1492 = vunpack.c.h.b16 %v1481
        %v1493 = vunpack.c.l.b16 %v1482
        %v1494 = vunpack.c.h.b16 %v1482
        %v1495 = vpack.c.b16 %v1487, %v1487
        %v1496 = vpack.c.b16 %v1488, %v1488
        %v1497 = vpack.c.b16 %v1489, %v1489
        %v1498 = vpack.c.b16 %v1490, %v1490
        %v1499 = vpack.c.b16 %v1491, %v1491
        %v1500 = vpack.c.b16 %v1492, %v1492
        %v1501 = vpack.c.b16 %v1493, %v1493
        %v1502 = vpack.c.b16 %v1494, %v1494
        %1511 = vst [vmem:[%s378 + $0x4] sm:$0xf] %v1495
        %1512 = vst [vmem:[%s378 + $0xc] sm:$0xf] %v1496
        %1513 = vst [vmem:[%s378 + $0x14] sm:$0xf] %v1497
        %1514 = vst [vmem:[%s378 + $0x1c] sm:$0xf] %v1498
        %1515 = vst [vmem:[%s378 + $0x24] sm:$0xf] %v1499
        %1516 = vst [vmem:[%s378 + $0x2c] sm:$0xf] %v1500
        %1517 = vst [vmem:[%s378 + $0x34] sm:$0xf] %v1501
        %1518 = vst [vmem:[%s378 + $0x3c] sm:$0xf] %v1502
        %v1519 = vmul.f32 %v753, %v958
        %v1520 = vmul.f32 %v757, %v959
        %v1521 = vmul.f32 %v763, %v960
        %v1522 = vmul.f32 %v767, %v961
        %v1523 = vmul.f32 %v773, %v962
        %v1524 = vmul.f32 %v777, %v963
        %v1525 = vmul.f32 %v783, %v964
        %v1526 = vmul.f32 %v787, %v965
        %v1527 = vmul.f32 %v753, %v991
        %v1528 = vmul.f32 %v757, %v993
        %v1529 = vmul.f32 %v763, %v995
        %v1530 = vmul.f32 %v767, %v997
        %v1531 = vmul.f32 %v773, %v999
        %v1532 = vmul.f32 %v777, %v1001
        %v1533 = vmul.f32 %v783, %v1003
        %v1534 = vmul.f32 %v787, %v1005
        %1543 = vrot.lane.b32.xlu0 %v1527, 64
        %v1544 = vpop.permute.xlu0 %1543
        %1545 = vrot.lane.b32.xlu0 %v1528, 64
        %v1546 = vpop.permute.xlu0 %1545
        %1547 = vrot.lane.b32.xlu0 %v1529, 64
        %v1548 = vpop.permute.xlu0 %1547
        %1549 = vrot.lane.b32.xlu0 %v1530, 64
        %v1550 = vpop.permute.xlu0 %1549
        %1551 = vrot.lane.b32.xlu0 %v1531, 64
        %v1552 = vpop.permute.xlu0 %1551
        %1553 = vrot.lane.b32.xlu0 %v1532, 64
        %v1554 = vpop.permute.xlu0 %1553
        %1555 = vrot.lane.b32.xlu0 %v1533, 64
        %v1556 = vpop.permute.xlu0 %1555
        %1557 = vrot.lane.b32.xlu0 %v1534, 64
        %v1558 = vpop.permute.xlu0 %1557
        %v1567 = vsub.f32 %v1519, %v1544
        %v1568 = vsub.f32 %v1520, %v1546
        %v1569 = vsub.f32 %v1521, %v1548
        %v1570 = vsub.f32 %v1522, %v1550
        %v1571 = vsub.f32 %v1523, %v1552
        %v1572 = vsub.f32 %v1524, %v1554
        %v1573 = vsub.f32 %v1525, %v1556
        %v1574 = vsub.f32 %v1526, %v1558
        %v1575 = vmul.f32 %v753, %v1071
        %v1576 = vmul.f32 %v757, %v1073
        %v1577 = vmul.f32 %v763, %v1075
        %v1578 = vmul.f32 %v767, %v1077
        %v1579 = vmul.f32 %v773, %v1079
        %v1580 = vmul.f32 %v777, %v1081
        %v1581 = vmul.f32 %v783, %v1083
        %v1582 = vmul.f32 %v787, %v1085
        %v1583 = vmul.f32 %v753, %v966
        %v1584 = vmul.f32 %v757, %v967
        %v1585 = vmul.f32 %v763, %v968
        %v1586 = vmul.f32 %v767, %v969
        %v1587 = vmul.f32 %v773, %v970
        %v1588 = vmul.f32 %v777, %v971
        %v1589 = vmul.f32 %v783, %v972
        %v1590 = vmul.f32 %v787, %v973
        %1599 = vrot.lane.b32.xlu0 %v1583, 64
        %v1600 = vpop.permute.xlu0 %1599
        %1601 = vrot.lane.b32.xlu0 %v1584, 64
        %v1602 = vpop.permute.xlu0 %1601
        %1603 = vrot.lane.b32.xlu0 %v1585, 64
        %v1604 = vpop.permute.xlu0 %1603
        %1605 = vrot.lane.b32.xlu0 %v1586, 64
        %v1606 = vpop.permute.xlu0 %1605
        %1607 = vrot.lane.b32.xlu0 %v1587, 64
        %v1608 = vpop.permute.xlu0 %1607
        %1609 = vrot.lane.b32.xlu0 %v1588, 64
        %v1610 = vpop.permute.xlu0 %1609
        %1611 = vrot.lane.b32.xlu0 %v1589, 64
        %v1612 = vpop.permute.xlu0 %1611
        %1613 = vrot.lane.b32.xlu0 %v1590, 64
        %v1614 = vpop.permute.xlu0 %1613
        %v1623 = vadd.f32 %v1575, %v1600
        %v1624 = vadd.f32 %v1576, %v1602
        %v1625 = vadd.f32 %v1577, %v1604
        %v1626 = vadd.f32 %v1578, %v1606
        %v1627 = vadd.f32 %v1579, %v1608
        %v1628 = vadd.f32 %v1580, %v1610
        %v1629 = vadd.f32 %v1581, %v1612
        %v1630 = vadd.f32 %v1582, %v1614
        %v1631 = vsel %vm1150, %v1567, %v1623
        %v1632 = vsel %vm1150, %v1568, %v1624
        %v1633 = vsel %vm1150, %v1569, %v1625
        %v1634 = vsel %vm1150, %v1570, %v1626
        %v1635 = vsel %vm1150, %v1571, %v1627
        %v1636 = vsel %vm1150, %v1572, %v1628
        %v1637 = vsel %vm1150, %v1573, %v1629
        %v1638 = vsel %vm1150, %v1574, %v1630
        %v1639 = vpack.c.bf16 %v1632, %v1631
        %v1640 = vpack.c.bf16 %v1634, %v1633
        %v1641 = vpack.c.bf16 %v1636, %v1635
        %v1642 = vpack.c.bf16 %v1638, %v1637
        %v1647 = vunpack.c.l.b16 %v1639
        %v1648 = vunpack.c.h.b16 %v1639
        %v1649 = vunpack.c.l.b16 %v1640
        %v1650 = vunpack.c.h.b16 %v1640
        %v1651 = vunpack.c.l.b16 %v1641
        %v1652 = vunpack.c.h.b16 %v1641
        %v1653 = vunpack.c.l.b16 %v1642
        %v1654 = vunpack.c.h.b16 %v1642
        %v1655 = vpack.c.b16 %v1647, %v1647
        %v1656 = vpack.c.b16 %v1648, %v1648
        %v1657 = vpack.c.b16 %v1649, %v1649
        %v1658 = vpack.c.b16 %v1650, %v1650
        %v1659 = vpack.c.b16 %v1651, %v1651
        %v1660 = vpack.c.b16 %v1652, %v1652
        %v1661 = vpack.c.b16 %v1653, %v1653
        %v1662 = vpack.c.b16 %v1654, %v1654
        %1671 = vst [vmem:[%s385 + $0x4] sm:$0xf] %v1655
        %1672 = vst [vmem:[%s385 + $0xc] sm:$0xf] %v1656
        %1673 = vst [vmem:[%s385 + $0x14] sm:$0xf] %v1657
        %1674 = vst [vmem:[%s385 + $0x1c] sm:$0xf] %v1658
        %1675 = vst [vmem:[%s385 + $0x24] sm:$0xf] %v1659
        %1676 = vst [vmem:[%s385 + $0x2c] sm:$0xf] %v1660
        %1677 = vst [vmem:[%s385 + $0x34] sm:$0xf] %v1661
        %1678 = vst [vmem:[%s385 + $0x3c] sm:$0xf] %v1662
        %v1679 = vpack.c.bf16 %v924, %v920
        %v1680 = vpack.c.bf16 %v926, %v922
        %v1681 = vpack.c.bf16 %v934, %v930
        %v1682 = vpack.c.bf16 %v936, %v932
        %v1683 = vpack.c.bf16 %v944, %v940
        %v1684 = vpack.c.bf16 %v946, %v942
        %v1685 = vpack.c.bf16 %v954, %v950
        %v1686 = vpack.c.bf16 %v956, %v952
        %v1695 = vunpack.c.l.b16 %v1679
        %v1696 = vunpack.c.l.b16 %v1680
        %v1697 = vunpack.c.h.b16 %v1679
        %v1698 = vunpack.c.h.b16 %v1680
        %v1699 = vunpack.c.l.b16 %v1681
        %v1700 = vunpack.c.l.b16 %v1682
        %v1701 = vunpack.c.h.b16 %v1681
        %v1702 = vunpack.c.h.b16 %v1682
        %v1703 = vunpack.c.l.b16 %v1683
        %v1704 = vunpack.c.l.b16 %v1684
        %v1705 = vunpack.c.h.b16 %v1683
        %v1706 = vunpack.c.h.b16 %v1684
        %v1707 = vunpack.c.l.b16 %v1685
        %v1708 = vunpack.c.l.b16 %v1686
        %v1709 = vunpack.c.h.b16 %v1685
        %v1710 = vunpack.c.h.b16 %v1686
        %v1711 = vpack.c.b16 %v1696, %v1695
        %v1712 = vpack.c.b16 %v1698, %v1697
        %v1713 = vpack.c.b16 %v1700, %v1699
        %v1714 = vpack.c.b16 %v1702, %v1701
        %v1715 = vpack.c.b16 %v1704, %v1703
        %v1716 = vpack.c.b16 %v1706, %v1705
        %v1717 = vpack.c.b16 %v1708, %v1707
        %v1718 = vpack.c.b16 %v1710, %v1709
        %1727 = vst [vmem:[%s392] sm:$0xff] %v1711
        %1728 = vst [vmem:[%s392 + $0x8] sm:$0xff] %v1712
        %1729 = vst [vmem:[%s392 + $0x10] sm:$0xff] %v1713
        %1730 = vst [vmem:[%s392 + $0x18] sm:$0xff] %v1714
        %1731 = vst [vmem:[%s392 + $0x20] sm:$0xff] %v1715
        %1732 = vst [vmem:[%s392 + $0x28] sm:$0xff] %v1716
        %1733 = vst [vmem:[%s392 + $0x30] sm:$0xff] %v1717
        %1734 = vst [vmem:[%s392 + $0x38] sm:$0xff] %v1718
        %s1735 = sand.u32 %s192, 1
        %s1736 = scalar_lea.sflag [#allocation4], %s1735
        %s1737 = sand.u32 %s192, 1
        %s1738 = smul.addr %s1737, 64
        %s1739 = scalar_lea.vmem [#allocation5], %s1738
        %s1740 = sand.u32 %s27, 1
        %s1741 = scalar_lea.sflag [#allocation7], %s1740
        %s1742 = sand.u32 %s220, 1
        %s1743 = smul.addr %s1742, 64
        %s1744 = scalar_lea.vmem [#allocation6], %s1743
        %s1745 = sand.u32 %s27, 1
        %s1746 = scalar_lea.sflag [#allocation7], %s1745
        %s1747 = sand.u32 %s248, 1
        %s1748 = smul.addr %s1747, 64
        %s1749 = scalar_lea.vmem [#allocation8], %s1748
        // Predicated region
        $region49: #{tpu_custom_call.1} parent=43 // pred_check
          %p1750 = pneg %p202
        $region50: #{tpu_custom_call.1} parent=43 // pred_check_branch
          %1752 = sbr.rel (%p1750) target = $region52
        $region51: #{tpu_custom_call.1} parent=43 // pred_region
          %s1753 = smul.u32 8, %s32
          %s1755 = ssub.s32 1024, 1024
          %1756 = vsyncadd %s1736, %s1755
          %s1757 = smul.addr %s1753, 2
          %s1758 = smul.addr %s31, 32
          %s1759 = sadd.s32 %s1757, %s1758
          %s1760 = smul.addr %s1759, 64
          %s1761 = scalar_lea.hbm %s6, %s1760
          %s1762 = sshll.u32 %s1739, 4
          %s1763 = int_to_ptr.vmem [resolvable:$true] %s1762
          %1768 = dma.vmem_to_hbm [thread:$0]  %s1763, 1024, %s1761, %s1736, 128, 128, 8
        $region52: #{tpu_custom_call.1} parent=43 // pred_fallthru
          _
        // Predicated region
        $region53: #{tpu_custom_call.1} parent=43 // pred_check
          %p1769 = pneg %p230
        $region54: #{tpu_custom_call.1} parent=43 // pred_check_branch
          %1771 = sbr.rel (%p1769) target = $region56
        $region55: #{tpu_custom_call.1} parent=43 // pred_region
          %s1772 = smul.u32 8, %s32
          %s1774 = ssub.s32 1024, 1024
          %1775 = vsyncadd %s1741, %s1774
          %s1776 = smul.addr %s1772, 2
          %s1777 = smul.addr %s31, 32
          %s1778 = sadd.s32 %s1776, %s1777
          %s1779 = smul.addr %s1778, 64
          %s1780 = scalar_lea.hbm %s7, %s1779
          %s1781 = sshll.u32 %s1744, 4
          %s1782 = int_to_ptr.vmem [resolvable:$true] %s1781
          %1787 = dma.vmem_to_hbm [thread:$0]  %s1782, 1024, %s1780, %s1741, 128, 128, 8
        $region56: #{tpu_custom_call.1} parent=43 // pred_fallthru
          _
        // Predicated region
        $region57: #{tpu_custom_call.1} parent=43 // pred_check
          %p1788 = pneg %p258
        $region58: #{tpu_custom_call.1} parent=43 // pred_check_branch
          %1790 = sbr.rel (%p1788) target = $region60
        $region59: #{tpu_custom_call.1} parent=43 // pred_region
          %s1791 = smul.u32 8, %s32
          %s1793 = ssub.s32 1024, 1024
          %1794 = vsyncadd %s1746, %s1793
          %s1795 = smul.addr %s1791, 2
          %s1796 = smul.addr %s31, 32
          %s1797 = sadd.s32 %s1795, %s1796
          %s1798 = smul.addr %s1797, 64
          %s1799 = scalar_lea.hbm %s8, %s1798
          %s1800 = sshll.u32 %s1749, 4
          %s1801 = int_to_ptr.vmem [resolvable:$true] %s1800
          %1806 = dma.vmem_to_hbm [thread:$0]  %s1801, 1024, %s1799, %s1746, 128, 128, 8
        $region60: #{tpu_custom_call.1} parent=43 // pred_fallthru
          _
      $region44: #{tpu_custom_call.1} parent=5 // pred_fallthru
        _
      %p1807 = scmp.le.s32.totalorder 2, %s22
      // Predicated region
      $region61: #{tpu_custom_call.1} parent=5 // pred_check
        %p1808 = pneg %p1807
      $region62: #{tpu_custom_call.1} parent=5 // pred_check_branch
        %1810 = sbr.rel (%p1808) target = $region64
      $region63: #{tpu_custom_call.1} parent=5 // pred_region
        %s1811 = ssub.s32 %s22, 2
        // Predicated region
        $region65: #{tpu_custom_call.1} parent=63 // pred_check
          %p1812 = pneg %p208
        $region66: #{tpu_custom_call.1} parent=63 // pred_check_branch
          %1814 = sbr.rel (%p1812) target = $region68
        $region67: #{tpu_custom_call.1} parent=63 // pred_region
          %s1815 = sand.u32 %s193, 1
          %s1816 = scalar_lea.sflag [#allocation4], %s1815
          %s1817 = sand.u32 %s193, 1
          %s1818 = smul.addr %s1817, 64
          %s1819 = scalar_lea.vmem [#allocation5], %s1818
          %1820 = dma.done %s1816, 1024
        $region68: #{tpu_custom_call.1} parent=63 // pred_fallthru
          _
        // Predicated region
        $region69: #{tpu_custom_call.1} parent=63 // pred_check
          %p1821 = pneg %p236
        $region70: #{tpu_custom_call.1} parent=63 // pred_check_branch
          %1823 = sbr.rel (%p1821) target = $region72
        $region71: #{tpu_custom_call.1} parent=63 // pred_region
          %s1824 = sand.u32 %s28, 1
          %s1825 = scalar_lea.sflag [#allocation7], %s1824
          %s1826 = sand.u32 %s221, 1
          %s1827 = smul.addr %s1826, 64
          %s1828 = scalar_lea.vmem [#allocation6], %s1827
          %1829 = dma.done %s1825, 1024
        $region72: #{tpu_custom_call.1} parent=63 // pred_fallthru
          _
        // Predicated region
        $region73: #{tpu_custom_call.1} parent=63 // pred_check
          %p1830 = pneg %p264
        $region74: #{tpu_custom_call.1} parent=63 // pred_check_branch
          %1832 = sbr.rel (%p1830) target = $region76
        $region75: #{tpu_custom_call.1} parent=63 // pred_region
          %s1833 = sand.u32 %s28, 1
          %s1834 = scalar_lea.sflag [#allocation7], %s1833
          %s1835 = sand.u32 %s249, 1
          %s1836 = smul.addr %s1835, 64
          %s1837 = scalar_lea.vmem [#allocation8], %s1836
          %1838 = dma.done %s1834, 1024
        $region76: #{tpu_custom_call.1} parent=63 // pred_fallthru
          _
      $region64: #{tpu_custom_call.1} parent=5 // pred_fallthru
        _
    $region6: #{tpu_custom_call.1} parent=1 // loop_footer
      %s26 = sadd.s32 1, %s22
    $region7: #{tpu_custom_call.1} parent=1 // loop_footer_branch
      %21 = sbr.rel target = $region3
    $region8: #{tpu_custom_call.1} parent=1 // loop_exit
      _
    %1839 = vsyncpa [#allocation3], 1
    %s1840 = scalar_lea.sflag [#allocation3], 1
    %1841 = vsyncpa %s1840, 1
    %1842 = vsyncpa [#allocation4], 1
    %s1843 = scalar_lea.sflag [#allocation4], 1
    %1844 = vsyncpa %s1843, 1
    %1845 = vsyncpa [#allocation7], 1
    %s1846 = scalar_lea.sflag [#allocation7], 1
    %1847 = vsyncpa %s1846, 1

</llo_original>
